<compile_context>
chip_gen: v6e
topology: v6e:2x2x1
jax: 0.10.0
libtpu: 0.0.40
codegen_flags: <defaults>
</compile_context>

<pallas_src>
import functools

import jax
import jax.numpy as jnp
from jax.experimental import pallas as pl
from jax.experimental.pallas import tpu as pltpu


# ---------------------------------------------------------------------------
# Fused kernel: stem conv (s2d 2x2 taps) + BN2d + SiLU + global average pool
#               + embedding Linear + BN1d + L2 normalize.  One image per step.
# ---------------------------------------------------------------------------
def _fused_triplet_kernel(xs_ref, wconv_ref, sscale_ref, sbias_ref,
                          wemb_ref, hscale_ref, hbias_ref, o_ref, *, ho, wo):
    # xs_ref:     (Hs, Ws, K4)       s2d padded input for one image (bf16)
    # wconv_ref:  (2, 2, K4, Cstem)  s2d-rearranged conv weight (bf16)
    # sscale_ref: (1, Cstem)         folded stem BN scale (f32)
    # sbias_ref:  (1, Cstem)         folded stem BN bias  (f32)
    # wemb_ref:   (Cstem, E)         embedding weight (f32)
    # hscale_ref: (1, E)             folded BN1d scale (f32)
    # hbias_ref:  (1, E)             folded BN1d bias  (f32)
    # o_ref:      (1, 1, E)          L2-normalized embedding for this image
    k4 = xs_ref.shape[-1]
    cstem = wconv_ref.shape[-1]
    e = o_ref.shape[-1]

    # Stride-2 3x3 conv == dense 2x2 stride-1 conv over the space-to-depth
    # input: 4 accumulating MXU dots over statically-sliced VMEM taps.
    acc = jnp.zeros((ho * wo, cstem), jnp.float32)
    for a in range(2):
        for b in range(2):
            patch = xs_ref[a:a + ho, b:b + wo, :].reshape(ho * wo, k4)
            acc = acc + jnp.dot(patch, wconv_ref[a, b],
                                preferred_element_type=jnp.float32)

    y = acc * sscale_ref[...] + sbias_ref[...]               # folded BatchNorm2d
    y = y * jax.nn.sigmoid(y)                                # SiLU (EUP)
    pooled = jnp.sum(y, axis=0, keepdims=True) * (1.0 / float(ho * wo))

    # Head: Linear (no bias) -> folded BatchNorm1d (eval) -> L2 normalize.
    emb = jnp.dot(pooled, wemb_ref[...],
                  preferred_element_type=jnp.float32)        # (1, E)
    z = emb * hscale_ref[...] + hbias_ref[...]
    # F.normalize(z, p=2, dim=1) == z / max(||z||_2, 1e-12); rsqrt -> EUP.
    ssq = jnp.sum(z * z, axis=1, keepdims=True)
    o_ref[...] = (z * jax.lax.rsqrt(jnp.maximum(ssq, 1e-24))).reshape(1, 1, e)


# ---------------------------------------------------------------------------
# Wrapper-side layout helpers (pure XLA, ~1x input bytes — no im2col blowup)
# ---------------------------------------------------------------------------
def _space_to_depth_2x2(x_pad):
    """(N, Hp, Wp, C) -> (N, Hp//2, Wp//2, 4*C); channel order (p, q, c)."""
    n, hp, wp, c = x_pad.shape
    xs = x_pad.reshape(n, hp // 2, 2, wp // 2, 2, c)
    xs = xs.transpose(0, 1, 3, 2, 4, 5)
    return xs.reshape(n, hp // 2, wp // 2, 4 * c)


def _s2d_conv_weight(w_hwio):
    """(3, 3, Cin, Cout) conv weight -> (2, 2, 4*Cin, Cout) s2d tap weight."""
    kh, kw, cin, cout = w_hwio.shape
    w2 = jnp.zeros((2, 2, 4 * cin, cout), w_hwio.dtype)
    for a in range(2):
        for b in range(2):
            for p in range(2):
                for q in range(2):
                    i, j = 2 * a + p, 2 * b + q
                    if i < kh and j < kw:
                        sl = slice((p * 2 + q) * cin, (p * 2 + q + 1) * cin)
                        w2 = w2.at[a, b, sl, :].set(w_hwio[i, j])
    return w2


# ---------------------------------------------------------------------------
# Forward wrapper
# ---------------------------------------------------------------------------
def triplet_forward(x_nchw, params):
    x = jnp.transpose(x_nchw, (0, 2, 3, 1)).astype(jnp.float32)  # NCHW -> NHWC
    N, H, W, Cin = x.shape
    assert H % 2 == 0 and W % 2 == 0, "even spatial dims expected"

    # PyTorch Conv2d weight (Cout, Cin, kh, kw) -> HWIO (kh, kw, Cin, Cout).
    w_hwio = jnp.transpose(params["stem_w"], (2, 3, 1, 0))
    _, _, _, Cstem = w_hwio.shape
    Ho, Wo = H // 2, W // 2                 # 3x3, stride 2, pad 1, even H/W

    # pad=1 + space-to-depth(2): stride-2 conv becomes a dense 2x2 stride-1
    # conv.  This is the only HBM relayout and moves ~1x the input bytes.
    x_pad = jnp.pad(x, ((0, 0), (1, 1), (1, 1), (0, 0)))
    xs2d = _space_to_depth_2x2(x_pad).astype(jnp.bfloat16)   # (N, Hs, Ws, 4Cin)
    _, Hs, Ws, K4 = xs2d.shape
    w2 = _s2d_conv_weight(w_hwio).astype(jnp.bfloat16)       # (2, 2, K4, Cstem)

    # Fold stem BatchNorm2d (eval, eps=1e-3) into scale/bias.
    s_scale = params["stem_bn_gamma"] * jax.lax.rsqrt(params["stem_bn_var"] + 1e-3)
    s_bias = params["stem_bn_beta"] - params["stem_bn_mean"] * s_scale
    s_scale = s_scale.reshape(1, Cstem).astype(jnp.float32)
    s_bias = s_bias.reshape(1, Cstem).astype(jnp.float32)

    # Embedding Linear (bias=False), PyTorch layout (out, in) -> (in, out).
    E = params["emb_w"].shape[0]
    w_emb = jnp.transpose(params["emb_w"], (1, 0)).astype(jnp.float32)

    # Fold last_bn BatchNorm1d (eval, eps=1e-3) into scale/bias.
    h_scale = params["bn1d_gamma"] * jax.lax.rsqrt(params["bn1d_var"] + 1e-3)
    h_bias = params["bn1d_beta"] - params["bn1d_mean"] * h_scale
    h_scale = h_scale.reshape(1, E).astype(jnp.float32)
    h_bias = h_bias.reshape(1, E).astype(jnp.float32)

    cost = pl.CostEstimate(
        flops=int(2 * N * Ho * Wo * 4 * K4 * Cstem + 2 * N * Cstem * E
                  + 10 * N * E),
        transcendentals=int(N * Ho * Wo * Cstem + N),
        bytes_accessed=int(xs2d.size * 2 + w2.size * 2 + 2 * Cstem * 4
                           + Cstem * E * 4 + 2 * E * 4 + N * E * 4),
    )
    out = pl.pallas_call(
        functools.partial(_fused_triplet_kernel, ho=Ho, wo=Wo),
        out_shape=jax.ShapeDtypeStruct((N, 1, E), jnp.float32),
        grid=(N,),
        in_specs=[
            pl.BlockSpec((None, Hs, Ws, K4), lambda n: (n, 0, 0, 0)),
            pl.BlockSpec((2, 2, K4, Cstem), lambda n: (0, 0, 0, 0)),
            pl.BlockSpec((1, Cstem), lambda n: (0, 0)),
            pl.BlockSpec((1, Cstem), lambda n: (0, 0)),
            pl.BlockSpec((Cstem, E), lambda n: (0, 0)),
            pl.BlockSpec((1, E), lambda n: (0, 0)),
            pl.BlockSpec((1, E), lambda n: (0, 0)),
        ],
        out_specs=pl.BlockSpec((1, 1, E), lambda n: (n, 0, 0)),
        compiler_params=pltpu.CompilerParams(
            dimension_semantics=("parallel",),
            vmem_limit_bytes=32 * 1024 * 1024),
        cost_estimate=cost,
    )(xs2d, w2, s_scale, s_bias, w_emb, h_scale, h_bias)
    return out.reshape(N, E)


# ---------------------------------------------------------------------------
# Pure-JAX reference of the same simplified forward (f32, for verification)
# ---------------------------------------------------------------------------
def _reference_forward(x_nchw, params):
    x = jnp.transpose(x_nchw, (0, 2, 3, 1)).astype(jnp.float32)
    w = jnp.transpose(params["stem_w"], (2, 3, 1, 0))        # HWIO
    y = jax.lax.conv_general_dilated(
        x, w, window_strides=(2, 2), padding=((1, 1), (1, 1)),
        dimension_numbers=("NHWC", "HWIO", "NHWC"))
    scale = params["stem_bn_gamma"] * jax.lax.rsqrt(params["stem_bn_var"] + 1e-3)
    bias = params["stem_bn_beta"] - params["stem_bn_mean"] * scale
    y = y * scale + bias
    y = y * jax.nn.sigmoid(y)
    pooled = jnp.mean(y, axis=(1, 2))
    emb = pooled @ params["emb_w"].T
    inv_std = jax.lax.rsqrt(params["bn1d_var"] + 1e-3)
    z = (emb - params["bn1d_mean"]) * inv_std * params["bn1d_gamma"] \
        + params["bn1d_beta"]
    nrm = jnp.sqrt(jnp.sum(z * z, axis=1, keepdims=True))
    return z / jnp.maximum(nrm, 1e-12)


# ---------------------------------------------------------------------------
# Deterministic parameter construction (PyTorch layouts) + demo
# ---------------------------------------------------------------------------
def make_params(key, cin, cstem, num_embeddings):
    ks = jax.random.split(key, 8)
    return {
        # Conv2d weight in PyTorch layout (Cout, Cin, kh, kw).
        "stem_w": 0.1 * jax.random.normal(ks[0], (cstem, cin, 3, 3), jnp.float32),
        "stem_bn_gamma": 1.0 + 0.1 * jax.random.normal(ks[1], (cstem,), jnp.float32),
        "stem_bn_beta": 0.1 * jax.random.normal(ks[2], (cstem,), jnp.float32),
        "stem_bn_mean": 0.1 * jax.random.normal(ks[3], (cstem,), jnp.float32),
        "stem_bn_var": jnp.abs(jax.random.normal(ks[4], (cstem,), jnp.float32)) + 0.5,
        # Replaced classifier: Linear(in -> num_embeddings, bias=False),
        # PyTorch layout (out_features, in_features).
        "emb_w": 0.05 * jax.random.normal(ks[5], (num_embeddings, cstem), jnp.float32),
        # last_bn: BatchNorm1d(512, eps=0.001) — affine, eval-mode stats.
        "bn1d_gamma": 1.0 + 0.1 * jax.random.normal(ks[6], (num_embeddings,), jnp.float32),
        "bn1d_beta": 0.1 * jax.random.normal(ks[7], (num_embeddings,), jnp.float32),
        "bn1d_mean": jnp.zeros((num_embeddings,), jnp.float32),
        "bn1d_var": jnp.ones((num_embeddings,), jnp.float32),
    }


if __name__ == "__main__":
    key = jax.random.PRNGKey(0)
    k_x, k_p = jax.random.split(key)

    # small shapes consistent with the module's forward
    N, Cin, H, W = 2, 3, 16, 16
    Cstem = 128                 # simplified backbone feature width (lane-dense)
    num_embeddings = 512        # last_bn is hard-coded BatchNorm1d(512)

    x = jax.random.normal(k_x, (N, Cin, H, W), jnp.float32)   # NCHW input
    params = make_params(k_p, Cin, Cstem, num_embeddings)

    out = jax.block_until_ready(triplet_forward(x, params))

    assert out.shape == (N, num_embeddings)
    # embeddings are L2-normalized along dim=1
    norms = jnp.sqrt(jnp.sum(out * out, axis=1))
    assert bool(jnp.all(jnp.abs(norms - 1.0) < 1e-4)), "not L2-normalized"

    # matches the pure-JAX f32 reference (stem MXU operands are bf16)
    ref = jax.block_until_ready(_reference_forward(x, params))
    assert bool(jnp.max(jnp.abs(out - ref)) < 2e-2), "mismatch vs reference"

    print("KERNEL_OK")
</pallas_src>

<mosaic_0001>
module attributes {stable_mosaic.version = 11 : i64} {
  func.func @_fused_triplet_kernel(%arg0: i32, %arg1: memref<1x9x9x12xbf16, #tpu.memory_space<vmem>>, %arg2: memref<2x2x12x128xbf16, #tpu.memory_space<vmem>>, %arg3: memref<1x128xf32, #tpu.memory_space<vmem>>, %arg4: memref<1x128xf32, #tpu.memory_space<vmem>>, %arg5: memref<128x512xf32, #tpu.memory_space<vmem>>, %arg6: memref<1x512xf32, #tpu.memory_space<vmem>>, %arg7: memref<1x512xf32, #tpu.memory_space<vmem>>, %arg8: memref<1x1x512xf32, #tpu.memory_space<vmem>>) attributes {dimension_semantics = [#tpu.dimension_semantics<parallel>], iteration_bounds = array<i64: 2>, scalar_prefetch = 0 : i64, scratch_operands = 0 : i64, tpu.core_type = #tpu.core_type<tc>, window_params = [{transform_indices = @transform_0, window_bounds = array<i64: 1, 9, 9, 12>}, {pipeline_mode = #tpu.pipeline_mode<synchronous>, transform_indices = @transform_1, window_bounds = array<i64: 2, 2, 12, 128>}, {pipeline_mode = #tpu.pipeline_mode<synchronous>, transform_indices = @transform_2, window_bounds = array<i64: 1, 128>}, {pipeline_mode = #tpu.pipeline_mode<synchronous>, transform_indices = @transform_3, window_bounds = array<i64: 1, 128>}, {pipeline_mode = #tpu.pipeline_mode<synchronous>, transform_indices = @transform_4, window_bounds = array<i64: 128, 512>}, {pipeline_mode = #tpu.pipeline_mode<synchronous>, transform_indices = @transform_5, window_bounds = array<i64: 1, 512>}, {pipeline_mode = #tpu.pipeline_mode<synchronous>, transform_indices = @transform_6, window_bounds = array<i64: 1, 512>}, {transform_indices = @transform_7, window_bounds = array<i64: 1, 1, 512>}]} {
    %cst = arith.constant 0.000000e+00 : f32
    %0 = vector.broadcast %cst : f32 to vector<64x128xf32>
    %c0 = arith.constant 0 : index
    %c0_0 = arith.constant 0 : index
    %c0_1 = arith.constant 0 : index
    %c0_2 = arith.constant 0 : index
    %1 = vector.load %arg1[%c0, %c0_0, %c0_1, %c0_2] : memref<1x9x9x12xbf16, #tpu.memory_space<vmem>>, vector<1x8x8x12xbf16>
    %2 = vector.shape_cast %1 : vector<1x8x8x12xbf16> to vector<8x8x12xbf16>
    %3 = vector.shape_cast %2 : vector<8x8x12xbf16> to vector<64x12xbf16>
    %c0_3 = arith.constant 0 : index
    %c0_4 = arith.constant 0 : index
    %c0_5 = arith.constant 0 : index
    %c0_6 = arith.constant 0 : index
    %4 = vector.load %arg2[%c0_3, %c0_4, %c0_5, %c0_6] : memref<2x2x12x128xbf16, #tpu.memory_space<vmem>>, vector<1x1x12x128xbf16>
    %5 = vector.shape_cast %4 : vector<1x1x12x128xbf16> to vector<12x128xbf16>
    %cst_7 = arith.constant dense<0.000000e+00> : vector<64x128xf32>
    %6 = tpu.matmul %3, %5, %cst_7 {dimension_numbers = #tpu.dot_dimension_numbers<[1], [0], [0], [1], [0, 0, 1, 1], [], []>} : vector<64x12xbf16>, vector<12x128xbf16>, vector<64x128xf32> -> vector<64x128xf32>
    %7 = arith.addf %0, %6 : vector<64x128xf32>
    %c0_8 = arith.constant 0 : index
    %c0_9 = arith.constant 0 : index
    %c1 = arith.constant 1 : index
    %c0_10 = arith.constant 0 : index
    %8 = vector.load %arg1[%c0_8, %c0_9, %c1, %c0_10] : memref<1x9x9x12xbf16, #tpu.memory_space<vmem>>, vector<1x8x8x12xbf16>
    %9 = vector.shape_cast %8 : vector<1x8x8x12xbf16> to vector<8x8x12xbf16>
    %10 = vector.shape_cast %9 : vector<8x8x12xbf16> to vector<64x12xbf16>
    %c0_11 = arith.constant 0 : index
    %c1_12 = arith.constant 1 : index
    %c0_13 = arith.constant 0 : index
    %c0_14 = arith.constant 0 : index
    %11 = vector.load %arg2[%c0_11, %c1_12, %c0_13, %c0_14] : memref<2x2x12x128xbf16, #tpu.memory_space<vmem>>, vector<1x1x12x128xbf16>
    %12 = vector.shape_cast %11 : vector<1x1x12x128xbf16> to vector<12x128xbf16>
    %cst_15 = arith.constant dense<0.000000e+00> : vector<64x128xf32>
    %13 = tpu.matmul %10, %12, %cst_15 {dimension_numbers = #tpu.dot_dimension_numbers<[1], [0], [0], [1], [0, 0, 1, 1], [], []>} : vector<64x12xbf16>, vector<12x128xbf16>, vector<64x128xf32> -> vector<64x128xf32>
    %14 = arith.addf %7, %13 : vector<64x128xf32>
    %c0_16 = arith.constant 0 : index
    %c1_17 = arith.constant 1 : index
    %c0_18 = arith.constant 0 : index
    %c0_19 = arith.constant 0 : index
    %15 = vector.load %arg1[%c0_16, %c1_17, %c0_18, %c0_19] : memref<1x9x9x12xbf16, #tpu.memory_space<vmem>>, vector<1x8x8x12xbf16>
    %16 = vector.shape_cast %15 : vector<1x8x8x12xbf16> to vector<8x8x12xbf16>
    %17 = vector.shape_cast %16 : vector<8x8x12xbf16> to vector<64x12xbf16>
    %c1_20 = arith.constant 1 : index
    %c0_21 = arith.constant 0 : index
    %c0_22 = arith.constant 0 : index
    %c0_23 = arith.constant 0 : index
    %18 = vector.load %arg2[%c1_20, %c0_21, %c0_22, %c0_23] : memref<2x2x12x128xbf16, #tpu.memory_space<vmem>>, vector<1x1x12x128xbf16>
    %19 = vector.shape_cast %18 : vector<1x1x12x128xbf16> to vector<12x128xbf16>
    %cst_24 = arith.constant dense<0.000000e+00> : vector<64x128xf32>
    %20 = tpu.matmul %17, %19, %cst_24 {dimension_numbers = #tpu.dot_dimension_numbers<[1], [0], [0], [1], [0, 0, 1, 1], [], []>} : vector<64x12xbf16>, vector<12x128xbf16>, vector<64x128xf32> -> vector<64x128xf32>
    %21 = arith.addf %14, %20 : vector<64x128xf32>
    %c0_25 = arith.constant 0 : index
    %c1_26 = arith.constant 1 : index
    %c1_27 = arith.constant 1 : index
    %c0_28 = arith.constant 0 : index
    %22 = vector.load %arg1[%c0_25, %c1_26, %c1_27, %c0_28] : memref<1x9x9x12xbf16, #tpu.memory_space<vmem>>, vector<1x8x8x12xbf16>
    %23 = vector.shape_cast %22 : vector<1x8x8x12xbf16> to vector<8x8x12xbf16>
    %24 = vector.shape_cast %23 : vector<8x8x12xbf16> to vector<64x12xbf16>
    %c1_29 = arith.constant 1 : index
    %c1_30 = arith.constant 1 : index
    %c0_31 = arith.constant 0 : index
    %c0_32 = arith.constant 0 : index
    %25 = vector.load %arg2[%c1_29, %c1_30, %c0_31, %c0_32] : memref<2x2x12x128xbf16, #tpu.memory_space<vmem>>, vector<1x1x12x128xbf16>
    %26 = vector.shape_cast %25 : vector<1x1x12x128xbf16> to vector<12x128xbf16>
    %cst_33 = arith.constant dense<0.000000e+00> : vector<64x128xf32>
    %27 = tpu.matmul %24, %26, %cst_33 {dimension_numbers = #tpu.dot_dimension_numbers<[1], [0], [0], [1], [0, 0, 1, 1], [], []>} : vector<64x12xbf16>, vector<12x128xbf16>, vector<64x128xf32> -> vector<64x128xf32>
    %28 = arith.addf %21, %27 : vector<64x128xf32>
    %c0_34 = arith.constant 0 : index
    %c0_35 = arith.constant 0 : index
    %29 = vector.load %arg3[%c0_34, %c0_35] : memref<1x128xf32, #tpu.memory_space<vmem>>, vector<1x128xf32>
    %30 = vector.broadcast %29 : vector<1x128xf32> to vector<64x128xf32>
    %31 = arith.mulf %28, %30 : vector<64x128xf32>
    %c0_36 = arith.constant 0 : index
    %c0_37 = arith.constant 0 : index
    %32 = vector.load %arg4[%c0_36, %c0_37] : memref<1x128xf32, #tpu.memory_space<vmem>>, vector<1x128xf32>
    %33 = vector.broadcast %32 : vector<1x128xf32> to vector<64x128xf32>
    %34 = arith.addf %31, %33 : vector<64x128xf32>
    %35 = arith.negf %34 : vector<64x128xf32>
    %36 = math.exp %35 : vector<64x128xf32>
    %cst_38 = arith.constant 1.000000e+00 : f32
    %37 = vector.broadcast %cst_38 : f32 to vector<64x128xf32>
    %38 = arith.addf %37, %36 : vector<64x128xf32>
    %39 = arith.divf %37, %38 : vector<64x128xf32>
    %40 = arith.mulf %34, %39 : vector<64x128xf32>
    %cst_39 = arith.constant dense<0.000000e+00> : vector<128xf32>
    %41 = vector.multi_reduction <add>, %40, %cst_39 [0] : vector<64x128xf32> to vector<128xf32>
    %42 = vector.shape_cast %41 : vector<128xf32> to vector<1x128xf32>
    %cst_40 = arith.constant 1.562500e-02 : f32
    %43 = vector.broadcast %cst_40 : f32 to vector<1x128xf32>
    %44 = arith.mulf %42, %43 : vector<1x128xf32>
    %c0_41 = arith.constant 0 : index
    %c0_42 = arith.constant 0 : index
    %45 = vector.load %arg5[%c0_41, %c0_42] : memref<128x512xf32, #tpu.memory_space<vmem>>, vector<128x512xf32>
    %cst_43 = arith.constant dense<0.000000e+00> : vector<1x512xf32>
    %46 = tpu.matmul %44, %45, %cst_43 {dimension_numbers = #tpu.dot_dimension_numbers<[1], [0], [0], [1], [0, 0, 1, 1], [], []>} : vector<1x128xf32>, vector<128x512xf32>, vector<1x512xf32> -> vector<1x512xf32>
    %c0_44 = arith.constant 0 : index
    %c0_45 = arith.constant 0 : index
    %47 = vector.load %arg6[%c0_44, %c0_45] : memref<1x512xf32, #tpu.memory_space<vmem>>, vector<1x512xf32>
    %48 = arith.mulf %46, %47 : vector<1x512xf32>
    %c0_46 = arith.constant 0 : index
    %c0_47 = arith.constant 0 : index
    %49 = vector.load %arg7[%c0_46, %c0_47] : memref<1x512xf32, #tpu.memory_space<vmem>>, vector<1x512xf32>
    %50 = arith.addf %48, %49 : vector<1x512xf32>
    %51 = arith.mulf %50, %50 : vector<1x512xf32>
    %cst_48 = arith.constant dense<0.000000e+00> : vector<1xf32>
    %52 = vector.multi_reduction <add>, %51, %cst_48 [1] : vector<1x512xf32> to vector<1xf32>
    %53 = vector.shape_cast %52 : vector<1xf32> to vector<1x1xf32>
    %cst_49 = arith.constant 1.000000e-24 : f32
    %54 = vector.broadcast %cst_49 : f32 to vector<1x1xf32>
    %55 = arith.maximumf %53, %54 : vector<1x1xf32>
    %56 = math.rsqrt %55 : vector<1x1xf32>
    %57 = vector.broadcast %56 : vector<1x1xf32> to vector<1x512xf32>
    %58 = arith.mulf %50, %57 : vector<1x512xf32>
    %59 = vector.shape_cast %58 : vector<1x512xf32> to vector<1x1x512xf32>
    %c0_50 = arith.constant 0 : index
    %c0_51 = arith.constant 0 : index
    %c0_52 = arith.constant 0 : index
    %60 = vector.load %arg8[%c0_50, %c0_51, %c0_52] : memref<1x1x512xf32, #tpu.memory_space<vmem>>, vector<1x1x512xf32>
    tpu.vector_store %arg8[%c0_50, %c0_51, %c0_52], %59 {strides = array<i32>} : memref<1x1x512xf32, #tpu.memory_space<vmem>>, vector<1x1x512xf32>,
    return
  }
  func.func @transform_0(%arg0: i32) -> (i32, i32, i32, i32) {
    %c0_i32 = arith.constant 0 : i32
    %c0_i32_0 = arith.constant 0 : i32
    %c0_i32_1 = arith.constant 0 : i32
    %c0_i32_2 = arith.constant 0 : i32
    return %arg0, %c0_i32, %c0_i32_0, %c0_i32_1 : i32, i32, i32, i32
  }
  func.func @transform_1(%arg0: i32) -> (i32, i32, i32, i32) {
    %c0_i32 = arith.constant 0 : i32
    %c0_i32_0 = arith.constant 0 : i32
    %c0_i32_1 = arith.constant 0 : i32
    %c0_i32_2 = arith.constant 0 : i32
    %c0_i32_3 = arith.constant 0 : i32
    return %c0_i32, %c0_i32_0, %c0_i32_1, %c0_i32_2 : i32, i32, i32, i32
  }
  func.func @transform_2(%arg0: i32) -> (i32, i32) {
    %c0_i32 = arith.constant 0 : i32
    %c0_i32_0 = arith.constant 0 : i32
    %c0_i32_1 = arith.constant 0 : i32
    return %c0_i32, %c0_i32_0 : i32, i32
  }
  func.func @transform_3(%arg0: i32) -> (i32, i32) {
    %c0_i32 = arith.constant 0 : i32
    %c0_i32_0 = arith.constant 0 : i32
    %c0_i32_1 = arith.constant 0 : i32
    return %c0_i32, %c0_i32_0 : i32, i32
  }
  func.func @transform_4(%arg0: i32) -> (i32, i32) {
    %c0_i32 = arith.constant 0 : i32
    %c0_i32_0 = arith.constant 0 : i32
    %c0_i32_1 = arith.constant 0 : i32
    return %c0_i32, %c0_i32_0 : i32, i32
  }
  func.func @transform_5(%arg0: i32) -> (i32, i32) {
    %c0_i32 = arith.constant 0 : i32
    %c0_i32_0 = arith.constant 0 : i32
    %c0_i32_1 = arith.constant 0 : i32
    return %c0_i32, %c0_i32_0 : i32, i32
  }
  func.func @transform_6(%arg0: i32) -> (i32, i32) {
    %c0_i32 = arith.constant 0 : i32
    %c0_i32_0 = arith.constant 0 : i32
    %c0_i32_1 = arith.constant 0 : i32
    return %c0_i32, %c0_i32_0 : i32, i32
  }
  func.func @transform_7(%arg0: i32) -> (i32, i32, i32) {
    %c0_i32 = arith.constant 0 : i32
    %c0_i32_0 = arith.constant 0 : i32
    %c0_i32_1 = arith.constant 0 : i32
    return %arg0, %c0_i32, %c0_i32_0 : i32, i32, i32
  }
}

</mosaic_0001>

<llo_original>
// kernel: tpu_custom_call.1
$region0: #{tpu_custom_call.1}
  #allocation0 [shape = 'u32[]', space=smem, size = 0x4, offset = 0x4, fixed_abs, tag = 'smem constant byte address 0x4 - core index']
  #allocation1 [shape = 'u32[144,128]{1,0:T(1,128)}', space=vmem, size = 0x12000, scoped, tag = 'internal scratch']
  %s0 = inlined_call_operand.vmem [shape: bf16[2,9,9,12], index: 0, kind: input, shape index: {}]
  %s1 = inlined_call_operand.vmem [shape: bf16[2,2,12,128], index: 1, kind: input, shape index: {}]
  %s2 = inlined_call_operand.vmem [shape: f32[1,128], index: 2, kind: input, shape index: {}]
  %s3 = inlined_call_operand.vmem [shape: f32[1,128], index: 3, kind: input, shape index: {}]
  %s4 = inlined_call_operand.hbm [shape: f32[128,512], index: 4, kind: input, shape index: {}]
  %s5 = inlined_call_operand.vmem [shape: f32[1,512], index: 5, kind: input, shape index: {}]
  %s6 = inlined_call_operand.vmem [shape: f32[1,512], index: 6, kind: input, shape index: {}]
  %s7 = inlined_call_operand.hbm [shape: f32[2,1,512], index: 7, kind: output, shape index: {}]
  %s8 = sld [smem:[#allocation0]]
  $region65: #{tpu_custom_call.1} parent=0
    _
  %s10 = ssub.s32 1, %s8
  %s11 = scalar_select 0, %s10, %s8
  $region1: #{tpu_custom_call.1} parent=0
    #allocation2 [shape = 'u8[262144]{0}', space=vmem, size = 0x40000, scoped, tag = 'input window, operand 4, single buffered']
    #allocation3 [shape = 's32[2]{0}', space=sflag, size = 0x8, scoped, tag = 'scoped memory for tpu_custom_call.1']
    #allocation4 [shape = 's32[2]{0}', space=sflag, size = 0x8, scoped, tag = 'scoped memory for tpu_custom_call.1']
    #allocation5 [shape = 'u8[4096]{0}', space=vmem, size = 0x1000, scoped, tag = 'output window, operand 0']
    %12 = vsyncpa [#allocation3], 0
    %13 = vsyncpa [#allocation4], 0
    %s14 = scalar_lea.sflag [#allocation4], 1
    %15 = vsyncpa %s14, 0
    loop: start=0, step=1, limit=4
    $region2: #{tpu_custom_call.1} parent=1 // loop_pre_header
      _
    $region3: #{tpu_custom_call.1} parent=1 // loop_header
      %s17 = sphi 0, %s21
      %p18 = scmp.ge.s32.totalorder %s17, 4
      %s27 = sphi 0, %s29
      %s30 = sphi 0, %s27
      %s31 = sphi 0, %s30
      %s47 = sphi 0, %s31
      %s51 = sphi 0, %s51
      %s53 = sphi 0, %s51
      %s54 = sphi 0, %s53
      %s68 = sphi 0, %s54
      %s72 = sphi 0, %s72
      %s74 = sphi 0, %s72
      %s75 = sphi 0, %s74
      %s89 = sphi 0, %s75
      %s93 = sphi 0, %s93
      %s95 = sphi 0, %s93
      %s96 = sphi 0, %s95
      %s110 = sphi 0, %s96
      %s114 = sphi 0, %s114
      %s116 = sphi 0, %s114
      %s117 = sphi 0, %s116
      %s131 = sphi 0, %s117
      %s135 = sphi 0, %s135
      %s137 = sphi 0, %s135
      %s138 = sphi 0, %s137
      %s152 = sphi 0, %s138
      %s156 = sphi 0, %s156
      %s158 = sphi 0, %s156
      %s159 = sphi 0, %s158
      %s173 = sphi 0, %s159
      %s179 = sphi 0, %s181
      %s182 = sphi 0, %s179
      %s183 = sphi 0, %s182
      %s199 = sphi 0, %s183
    $region4: #{tpu_custom_call.1} parent=1 // loop_header_branch
      %20 = sbr.rel (%p18) target = $region8
    $region5: #{tpu_custom_call.1} parent=1 // loop_body
      %s22 = ssub.s32 %s17, 1
      %s23 = ssub.s32 %s17, 2
      %s24 = sadd.s32 %s17, 1
      %s25 = ssub.s32 %s17, %s24
      %p26 = scmp.eq.s32.totalorder %s25, 0
      %s28 = sadd.s32 %s27, 1
      %s29 = scalar_select %p26, %s27, %s28
      %p32 = pneg %p26
      %p33 = scmp.eq.s32.totalorder %s17, 1
      %p34 = por %p32, %p33
      %p35 = scmp.ne.s32.totalorder %s27, %s30
      %p36 = scmp.eq.s32.totalorder %s17, 0
      %p37 = por %p35, %p36
      %p38 = scmp.ne.s32.totalorder %s27, %s30
      %p39 = scmp.eq.s32.totalorder %s22, 1
      %p40 = por %p38, %p39
      %p41 = scmp.ne.s32.totalorder %s30, %s31
      %p42 = scmp.eq.s32.totalorder %s22, 0
      %p43 = por %p41, %p42
      %p44 = scmp.ne.s32.totalorder %s30, %s31
      %p45 = scmp.eq.s32.totalorder %s23, 1
      %p46 = por %p44, %p45
      %p48 = scmp.ne.s32.totalorder %s31, %s47
      %p49 = scmp.eq.s32.totalorder %s23, 0
      %p50 = por %p48, %p49
      %s52 = sadd.s32 %s51, 1
      %p55 = scmp.eq.s32.totalorder %s17, 1
      %p56 = scmp.ne.s32.totalorder %s51, %s53
      %p57 = scmp.eq.s32.totalorder %s17, 0
      %p58 = por %p56, %p57
      %p59 = scmp.ne.s32.totalorder %s51, %s53
      %p60 = scmp.eq.s32.totalorder %s22, 1
      %p61 = por %p59, %p60
      %p62 = scmp.ne.s32.totalorder %s53, %s54
      %p63 = scmp.eq.s32.totalorder %s22, 0
      %p64 = por %p62, %p63
      %p65 = scmp.ne.s32.totalorder %s53, %s54
      %p66 = scmp.eq.s32.totalorder %s23, 1
      %p67 = por %p65, %p66
      %p69 = scmp.ne.s32.totalorder %s54, %s68
      %p70 = scmp.eq.s32.totalorder %s23, 0
      %p71 = por %p69, %p70
      %s73 = sadd.s32 %s72, 1
      %p76 = scmp.eq.s32.totalorder %s17, 1
      %p77 = scmp.ne.s32.totalorder %s72, %s74
      %p78 = scmp.eq.s32.totalorder %s17, 0
      %p79 = por %p77, %p78
      %p80 = scmp.ne.s32.totalorder %s72, %s74
      %p81 = scmp.eq.s32.totalorder %s22, 1
      %p82 = por %p80, %p81
      %p83 = scmp.ne.s32.totalorder %s74, %s75
      %p84 = scmp.eq.s32.totalorder %s22, 0
      %p85 = por %p83, %p84
      %p86 = scmp.ne.s32.totalorder %s74, %s75
      %p87 = scmp.eq.s32.totalorder %s23, 1
      %p88 = por %p86, %p87
      %p90 = scmp.ne.s32.totalorder %s75, %s89
      %p91 = scmp.eq.s32.totalorder %s23, 0
      %p92 = por %p90, %p91
      %s94 = sadd.s32 %s93, 1
      %p97 = scmp.eq.s32.totalorder %s17, 1
      %p98 = scmp.ne.s32.totalorder %s93, %s95
      %p99 = scmp.eq.s32.totalorder %s17, 0
      %p100 = por %p98, %p99
      %p101 = scmp.ne.s32.totalorder %s93, %s95
      %p102 = scmp.eq.s32.totalorder %s22, 1
      %p103 = por %p101, %p102
      %p104 = scmp.ne.s32.totalorder %s95, %s96
      %p105 = scmp.eq.s32.totalorder %s22, 0
      %p106 = por %p104, %p105
      %p107 = scmp.ne.s32.totalorder %s95, %s96
      %p108 = scmp.eq.s32.totalorder %s23, 1
      %p109 = por %p107, %p108
      %p111 = scmp.ne.s32.totalorder %s96, %s110
      %p112 = scmp.eq.s32.totalorder %s23, 0
      %p113 = por %p111, %p112
      %s115 = sadd.s32 %s114, 1
      %p118 = scmp.eq.s32.totalorder %s17, 1
      %p119 = scmp.ne.s32.totalorder %s114, %s116
      %p120 = scmp.eq.s32.totalorder %s17, 0
      %p121 = por %p119, %p120
      %p122 = scmp.ne.s32.totalorder %s114, %s116
      %p123 = scmp.eq.s32.totalorder %s22, 1
      %p124 = por %p122, %p123
      %p125 = scmp.ne.s32.totalorder %s116, %s117
      %p126 = scmp.eq.s32.totalorder %s22, 0
      %p127 = por %p125, %p126
      %p128 = scmp.ne.s32.totalorder %s116, %s117
      %p129 = scmp.eq.s32.totalorder %s23, 1
      %p130 = por %p128, %p129
      %p132 = scmp.ne.s32.totalorder %s117, %s131
      %p133 = scmp.eq.s32.totalorder %s23, 0
      %p134 = por %p132, %p133
      %s136 = sadd.s32 %s135, 1
      %p139 = scmp.eq.s32.totalorder %s17, 1
      %p140 = scmp.ne.s32.totalorder %s135, %s137
      %p141 = scmp.eq.s32.totalorder %s17, 0
      %p142 = por %p140, %p141
      %p143 = scmp.ne.s32.totalorder %s135, %s137
      %p144 = scmp.eq.s32.totalorder %s22, 1
      %p145 = por %p143, %p144
      %p146 = scmp.ne.s32.totalorder %s137, %s138
      %p147 = scmp.eq.s32.totalorder %s22, 0
      %p148 = por %p146, %p147
      %p149 = scmp.ne.s32.totalorder %s137, %s138
      %p150 = scmp.eq.s32.totalorder %s23, 1
      %p151 = por %p149, %p150
      %p153 = scmp.ne.s32.totalorder %s138, %s152
      %p154 = scmp.eq.s32.totalorder %s23, 0
      %p155 = por %p153, %p154
      %s157 = sadd.s32 %s156, 1
      %p160 = scmp.eq.s32.totalorder %s17, 1
      %p161 = scmp.ne.s32.totalorder %s156, %s158
      %p162 = scmp.eq.s32.totalorder %s17, 0
      %p163 = por %p161, %p162
      %p164 = scmp.ne.s32.totalorder %s156, %s158
      %p165 = scmp.eq.s32.totalorder %s22, 1
      %p166 = por %p164, %p165
      %p167 = scmp.ne.s32.totalorder %s158, %s159
      %p168 = scmp.eq.s32.totalorder %s22, 0
      %p169 = por %p167, %p168
      %p170 = scmp.ne.s32.totalorder %s158, %s159
      %p171 = scmp.eq.s32.totalorder %s23, 1
      %p172 = por %p170, %p171
      %p174 = scmp.ne.s32.totalorder %s159, %s173
      %p175 = scmp.eq.s32.totalorder %s23, 0
      %p176 = por %p174, %p175
      %s177 = ssub.s32 %s17, %s24
      %p178 = scmp.eq.s32.totalorder %s177, 0
      %s180 = sadd.s32 %s179, 1
      %s181 = scalar_select %p178, %s179, %s180
      %p184 = pneg %p178
      %p185 = scmp.eq.s32.totalorder %s17, 1
      %p186 = por %p184, %p185
      %p187 = scmp.ne.s32.totalorder %s179, %s182
      %p188 = scmp.eq.s32.totalorder %s17, 0
      %p189 = por %p187, %p188
      %p190 = scmp.ne.s32.totalorder %s179, %s182
      %p191 = scmp.eq.s32.totalorder %s22, 1
      %p192 = por %p190, %p191
      %p193 = scmp.ne.s32.totalorder %s182, %s183
      %p194 = scmp.eq.s32.totalorder %s22, 0
      %p195 = por %p193, %p194
      %p196 = scmp.ne.s32.totalorder %s182, %s183
      %p197 = scmp.eq.s32.totalorder %s23, 1
      %p198 = por %p196, %p197
      %p200 = scmp.ne.s32.totalorder %s183, %s199
      %p201 = scmp.eq.s32.totalorder %s23, 0
      %p202 = por %p200, %p201
      %p203 = scmp.le.s32.totalorder 1, %s17
      %p204 = scmp.lt.s32.totalorder %s17, 3
      %p205 = pnand %p203, %p204
      %p206 = pneg %p205
      // Predicated region
      $region9: #{tpu_custom_call.1} parent=5 // pred_check
        _
      $region10: #{tpu_custom_call.1} parent=5 // pred_check_branch
        %208 = sbr.rel (%p205) target = $region12
      $region11: #{tpu_custom_call.1} parent=5 // pred_region
        %s209 = ssub.s32 %s17, 1
        // Predicated region
        $region13: #{tpu_custom_call.1} parent=11 // pred_check
          %p210 = pneg %p64
        $region14: #{tpu_custom_call.1} parent=11 // pred_check_branch
          %212 = sbr.rel (%p210) target = $region16
        $region15: #{tpu_custom_call.1} parent=11 // pred_region
          _
        $region16: #{tpu_custom_call.1} parent=11 // pred_fallthru
          _
        // Predicated region
        $region17: #{tpu_custom_call.1} parent=11 // pred_check
          %p213 = pneg %p85
        $region18: #{tpu_custom_call.1} parent=11 // pred_check_branch
          %215 = sbr.rel (%p213) target = $region20
        $region19: #{tpu_custom_call.1} parent=11 // pred_region
          _
        $region20: #{tpu_custom_call.1} parent=11 // pred_fallthru
          _
        // Predicated region
        $region21: #{tpu_custom_call.1} parent=11 // pred_check
          %p216 = pneg %p106
        $region22: #{tpu_custom_call.1} parent=11 // pred_check_branch
          %218 = sbr.rel (%p216) target = $region24
        $region23: #{tpu_custom_call.1} parent=11 // pred_region
          _
        $region24: #{tpu_custom_call.1} parent=11 // pred_fallthru
          _
        // Predicated region
        $region25: #{tpu_custom_call.1} parent=11 // pred_check
          %p219 = pneg %p127
        $region26: #{tpu_custom_call.1} parent=11 // pred_check_branch
          %221 = sbr.rel (%p219) target = $region28
        $region27: #{tpu_custom_call.1} parent=11 // pred_region
          %s223 = ssub.s32 8192, 8192
          %224 = vsyncadd [#allocation3], %s223
          %s225 = sshll.u32 [#allocation2], 4
          %s226 = int_to_ptr.vmem [resolvable:$true] %s225
          %231 = dma.hbm_to_vmem [thread:$0]  %s4, 8192, %s226, [#allocation3], 512, 512, 32
        $region28: #{tpu_custom_call.1} parent=11 // pred_fallthru
          _
        // Predicated region
        $region29: #{tpu_custom_call.1} parent=11 // pred_check
          %p232 = pneg %p148
        $region30: #{tpu_custom_call.1} parent=11 // pred_check_branch
          %234 = sbr.rel (%p232) target = $region32
        $region31: #{tpu_custom_call.1} parent=11 // pred_region
          _
        $region32: #{tpu_custom_call.1} parent=11 // pred_fallthru
          _
        // Predicated region
        $region33: #{tpu_custom_call.1} parent=11 // pred_check
          %p235 = pneg %p169
        $region34: #{tpu_custom_call.1} parent=11 // pred_check_branch
          %237 = sbr.rel (%p235) target = $region36
        $region35: #{tpu_custom_call.1} parent=11 // pred_region
          _
        $region36: #{tpu_custom_call.1} parent=11 // pred_fallthru
          _
      $region12: #{tpu_custom_call.1} parent=5 // pred_fallthru
        _
      %p238 = scmp.lt.s32.totalorder %s17, 2
      // Predicated region
      $region37: #{tpu_custom_call.1} parent=5 // pred_check
        %p239 = pneg %p238
      $region38: #{tpu_custom_call.1} parent=5 // pred_check_branch
        %241 = sbr.rel (%p239) target = $region40
      $region39: #{tpu_custom_call.1} parent=5 // pred_region
        // Predicated region
        $region41: #{tpu_custom_call.1} parent=39 // pred_check
          %p242 = pneg %p37
        $region42: #{tpu_custom_call.1} parent=39 // pred_check_branch
          %244 = sbr.rel (%p242) target = $region44
        $region43: #{tpu_custom_call.1} parent=39 // pred_region
          %p245 = scmp.lt.s32.totalorder %s17, 1
          %s246 = scalar_select %p245, %s17, 1
          %s247 = smul.addr %s246, 18
          %s248 = smul.addr %s247, 4
          %s249 = scalar_lea.vmem %s0, %s248
        $region44: #{tpu_custom_call.1} parent=39 // pred_fallthru
          _
      $region40: #{tpu_custom_call.1} parent=5 // pred_fallthru
        _
      %p250 = scmp.le.s32.totalorder 1, %s17
      %p251 = scmp.lt.s32.totalorder %s17, 3
      %p252 = pnand %p250, %p251
      %p253 = pneg %p252
      // Predicated region
      $region45: #{tpu_custom_call.1} parent=5 // pred_check
        _
      $region46: #{tpu_custom_call.1} parent=5 // pred_check_branch
        %255 = sbr.rel (%p252) target = $region48
      $region47: #{tpu_custom_call.1} parent=5 // pred_region
        %s256 = ssub.s32 %s17, 1
        // Predicated region
        $region49: #{tpu_custom_call.1} parent=47 // pred_check
          %p257 = pneg %p127
        $region50: #{tpu_custom_call.1} parent=47 // pred_check_branch
          %259 = sbr.rel (%p257) target = $region52
        $region51: #{tpu_custom_call.1} parent=47 // pred_region
          %260 = dma.done [#allocation3], 8192
        $region52: #{tpu_custom_call.1} parent=47 // pred_fallthru
          _
        %p261 = scmp.lt.s32.totalorder %s22, 1
        %s262 = scalar_select %p261, %s22, 1
        %s263 = smul.addr %s262, 18
        %s264 = smul.addr %s263, 4
        %s265 = scalar_lea.vmem %s0, %s264
        %p266 = pneg %p43
        %p267 = pneg %p40
        %p268 = pneg %p64
        %p269 = pneg %p61
        %p270 = pneg %p85
        %p271 = pneg %p82
        %p272 = pneg %p106
        %p273 = pneg %p103
        %p274 = pneg %p127
        %p275 = pneg %p124
        %p276 = pneg %p148
        %p277 = pneg %p145
        %p278 = pneg %p169
        %p279 = pneg %p166
        %p280 = pneg %p195
        %p281 = pneg %p192
        %s282 = sand.u32 %s182, 1
        %s283 = scalar_lea.sflag [#allocation4], %s282
        %s284 = sand.u32 %s182, 1
        %s285 = smul.addr %s284, 4
        %s286 = scalar_lea.vmem [#allocation5], %s285
        %p287 = scmp.lt.s32.totalorder %s22, 1
        %s288 = scalar_select %p287, %s22, 1
        %s289 = smul.addr %s288, 18
        %s290 = smul.addr %s289, 4
        %s291 = scalar_lea.vmem %s0, %s290
        %v293 = vld [vmem:[%s291] sm:$0xf]
        %v294 = vld [vmem:[%s291 + $0x8] sm:$0xf]
        %v295 = vld [vmem:[%s291 + $0x10] sm:$0xf]
        %v296 = vld [vmem:[%s291 + $0x18] sm:$0xf]
        %v297 = vld [vmem:[%s291 + $0x20] sm:$0xf]
        %v298 = vld [vmem:[%s291 + $0x28] sm:$0xf]
        %v299 = vld [vmem:[%s291 + $0x30] sm:$0xf]
        %v300 = vld [vmem:[%s291 + $0x38] sm:$0xf]
        %v301 = vld [vmem:[%s1] sm:$0xf]
        %v302 = vld [vmem:[%s1 + $0x4] sm:$0x3]
        %v303 = vld [vmem:[%s291 + $0x4] sm:$0x1]
        %v304 = vld [vmem:[%s291 + $0xc] sm:$0x1]
        %v305 = vld [vmem:[%s291 + $0x14] sm:$0x1]
        %v306 = vld [vmem:[%s291 + $0x1c] sm:$0x1]
        %v307 = vld [vmem:[%s291 + $0x24] sm:$0x1]
        %v308 = vld [vmem:[%s291 + $0x2c] sm:$0x1]
        %v309 = vld [vmem:[%s291 + $0x34] sm:$0x1]
        %v310 = vld [vmem:[%s291 + $0x3c] sm:$0x1]
        %vm311 = vsmask.f32 3328
        %vm312 = vsmask.f32 7440
        %vm313 = vmor %vm311, %vm312
        %v315 = vshrl.u32 %v293, 16
        %v317 = vrot.slane %v315, 4
        %v318 = vshll.u32 %v293, 16
        %v320 = vrot.slane %v318, 5
        %v321 = vor.u32 %v317, %v320
        %v322 = vrot.slane %v321, 4
        %v324 = vshll.u32 %v303, 16
        %v326 = vrot.slane %v324, 5
        %v327 = vsel %vm313, %v322, %v326
        %v329 = vshrl.u32 %v294, 16
        %v331 = vrot.slane %v329, 4
        %v332 = vshll.u32 %v294, 16
        %v334 = vrot.slane %v332, 5
        %v335 = vor.u32 %v331, %v334
        %v336 = vrot.slane %v335, 4
        %v338 = vshll.u32 %v304, 16
        %v340 = vrot.slane %v338, 5
        %v341 = vsel %vm313, %v336, %v340
        %v343 = vshrl.u32 %v295, 16
        %v345 = vrot.slane %v343, 4
        %v346 = vshll.u32 %v295, 16
        %v348 = vrot.slane %v346, 5
        %v349 = vor.u32 %v345, %v348
        %v350 = vrot.slane %v349, 4
        %v352 = vshll.u32 %v305, 16
        %v354 = vrot.slane %v352, 5
        %v355 = vsel %vm313, %v350, %v354
        %v357 = vshrl.u32 %v296, 16
        %v359 = vrot.slane %v357, 4
        %v360 = vshll.u32 %v296, 16
        %v362 = vrot.slane %v360, 5
        %v363 = vor.u32 %v359, %v362
        %v364 = vrot.slane %v363, 4
        %v366 = vshll.u32 %v306, 16
        %v368 = vrot.slane %v366, 5
        %v369 = vsel %vm313, %v364, %v368
        %v371 = vshrl.u32 %v297, 16
        %v373 = vrot.slane %v371, 4
        %v374 = vshll.u32 %v297, 16
        %v376 = vrot.slane %v374, 5
        %v377 = vor.u32 %v373, %v376
        %v378 = vrot.slane %v377, 4
        %v380 = vshll.u32 %v307, 16
        %v382 = vrot.slane %v380, 5
        %v383 = vsel %vm313, %v378, %v382
        %v385 = vshrl.u32 %v298, 16
        %v387 = vrot.slane %v385, 4
        %v388 = vshll.u32 %v298, 16
        %v390 = vrot.slane %v388, 5
        %v391 = vor.u32 %v387, %v390
        %v392 = vrot.slane %v391, 4
        %v394 = vshll.u32 %v308, 16
        %v396 = vrot.slane %v394, 5
        %v397 = vsel %vm313, %v392, %v396
        %v399 = vshrl.u32 %v299, 16
        %v401 = vrot.slane %v399, 4
        %v402 = vshll.u32 %v299, 16
        %v404 = vrot.slane %v402, 5
        %v405 = vor.u32 %v401, %v404
        %v406 = vrot.slane %v405, 4
        %v408 = vshll.u32 %v309, 16
        %v410 = vrot.slane %v408, 5
        %v411 = vsel %vm313, %v406, %v410
        %v413 = vshrl.u32 %v300, 16
        %v415 = vrot.slane %v413, 4
        %v416 = vshll.u32 %v300, 16
        %v418 = vrot.slane %v416, 5
        %v419 = vor.u32 %v415, %v418
        %v420 = vrot.slane %v419, 4
        %v422 = vshll.u32 %v310, 16
        %v424 = vrot.slane %v422, 5
        %v425 = vsel %vm313, %v420, %v424
        %s426 = scalar_lea.vmem %s1, 8
        %v427 = vld [vmem:[%s426] sm:$0xf]
        %v428 = vld [vmem:[%s426 + $0x4] sm:$0x3]
        %v429 = vunpack.c.l.b16 %v327
        %v430 = vunpack.c.l.b16 %v341
        %v431 = vunpack.c.l.b16 %v355
        %v432 = vunpack.c.l.b16 %v369
        %v433 = vunpack.c.l.b16 %v383
        %v434 = vunpack.c.l.b16 %v397
        %v435 = vunpack.c.l.b16 %v411
        %v436 = vunpack.c.l.b16 %v425
        %v437 = vpack.c.b16 %v430, %v429
        %v438 = vpack.c.b16 %v432, %v431
        %v439 = vpack.c.b16 %v434, %v433
        %v440 = vpack.c.b16 %v436, %v435
        %v443 = vunpack.c.l.b16 %v427
        %v444 = vunpack.c.l.b16 %v428
        %v445 = vpack.c.b16 %v444, %v443
        %vm446 = vcmask 97280
        %v448 = vsel %vm446, %v437, 0
        %v451 = vsel %vm446, %v438, 0
        %v454 = vsel %vm446, %v439, 0
        %v457 = vsel %vm446, %v440, 0
        %vm459 = vcmask 1045504
        %v461 = vsel %vm459, %v445, 0
        %463 = vmatprep.subr.bf16.mxu0 0
        %464 = vmatpush1.bf16.msra.mxu0 0
        %465 = vmatprep.subr.bf16.mxu0 0
        %466 = vmatpush1.bf16.msra.mxu0 0
        %467 = vmatprep.subr.bf16.mxu0 0
        %468 = vmatpush1.bf16.msra.mxu0 0
        %469 = vmatprep.subr.bf16.mxu0 0
        %470 = vmatpush1.bf16.msra.mxu0 0
        %471 = vmatprep.subr.bf16.mxu0 0
        %472 = vmatpush1.bf16.msra.mxu0 0
        %473 = vmatprep.subr.bf16.mxu0 0
        %474 = vmatpush1.bf16.msra.mxu0 0
        %475 = vmatprep.subr.bf16.mxu0 0
        %476 = vmatpush1.bf16.msra.mxu0 0
        %477 = vmatprep.subr.bf16.mxu0 0
        %478 = vmatpush1.bf16.msra.mxu0 %v461
        %479 = vmatprep.subr.bf16.mxu0 0
        %480 = vmatpush2.bf16.msra.mxu0 0
        %481 = vmatprep.subr.bf16.mxu0 0
        %482 = vmatpush2.bf16.msra.mxu0 0
        %483 = vmatprep.subr.bf16.mxu0 0
        %484 = vmatpush2.bf16.msra.mxu0 0
        %485 = vmatprep.subr.bf16.mxu0 0
        %486 = vmatpush2.bf16.msra.mxu0 0
        %487 = vmatprep.subr.bf16.mxu0 0
        %488 = vmatpush2.bf16.msra.mxu0 0
        %489 = vmatprep.subr.bf16.mxu0 0
        %490 = vmatpush2.bf16.msra.mxu0 0
        %491 = vmatprep.subr.bf16.mxu0 0
        %492 = vmatpush2.bf16.msra.mxu0 0
        %493 = vmatprep.subr.bf16.mxu0 0
        %494 = vmatpush2.bf16.msra.mxu0 0
        %495 = vmatprep.mubr.bf16.mxu0 0
        %496 = vmatmul.mubr.bf16.gmra.mxu0 %v448
        %v497 = vpop.f32.mrf.mxu0
        %v498 = vadd.f32 0.0, %v497
        %v499 = vpop.f32.mrf.mxu0
        %v500 = vpop.f32.mrf.mxu0
        %v501 = vadd.f32 0.0, %v500
        %v502 = vpop.f32.mrf.mxu0
        %503 = vmatprep.mubr.bf16.mxu0 0
        %504 = vmatmul.mubr.bf16.gmra.mxu0 %v451
        %v505 = vpop.f32.mrf.mxu0
        %v506 = vadd.f32 0.0, %v505
        %v507 = vpop.f32.mrf.mxu0
        %v508 = vpop.f32.mrf.mxu0
        %v509 = vadd.f32 0.0, %v508
        %v510 = vpop.f32.mrf.mxu0
        %511 = vmatprep.mubr.bf16.mxu0 0
        %512 = vmatmul.mubr.bf16.gmra.mxu0 %v454
        %v513 = vpop.f32.mrf.mxu0
        %v514 = vadd.f32 0.0, %v513
        %v515 = vpop.f32.mrf.mxu0
        %v516 = vpop.f32.mrf.mxu0
        %v517 = vadd.f32 0.0, %v516
        %v518 = vpop.f32.mrf.mxu0
        %519 = vmatprep.mubr.bf16.mxu0 0
        %520 = vmatmul.mubr.bf16.gmra.mxu0 %v457
        %v521 = vpop.f32.mrf.mxu0
        %v522 = vadd.f32 0.0, %v521
        %v523 = vpop.f32.mrf.mxu0
        %v524 = vpop.f32.mrf.mxu0
        %v525 = vadd.f32 0.0, %v524
        %v526 = vpop.f32.mrf.mxu0
        %527 = vdwg.mxu0
        %v536 = vunpack.c.l.b16 %v293
        %v537 = vunpack.c.l.b16 %v294
        %v538 = vunpack.c.l.b16 %v295
        %v539 = vunpack.c.l.b16 %v296
        %v540 = vunpack.c.l.b16 %v297
        %v541 = vunpack.c.l.b16 %v298
        %v542 = vunpack.c.l.b16 %v299
        %v543 = vunpack.c.l.b16 %v300
        %v544 = vpack.c.b16 %v537, %v536
        %v545 = vpack.c.b16 %v539, %v538
        %v546 = vpack.c.b16 %v541, %v540
        %v547 = vpack.c.b16 %v543, %v542
        %v550 = vunpack.c.l.b16 %v301
        %v551 = vunpack.c.l.b16 %v302
        %v552 = vpack.c.b16 %v551, %v550
        %v554 = vsel %vm446, %v544, 0
        %v557 = vsel %vm446, %v545, 0
        %v560 = vsel %vm446, %v546, 0
        %v563 = vsel %vm446, %v547, 0
        %v566 = vsel %vm459, %v552, 0
        %568 = vmatprep.subr.bf16.mxu0 0
        %569 = vmatpush1.bf16.msra.mxu0 0
        %570 = vmatprep.subr.bf16.mxu0 0
        %571 = vmatpush1.bf16.msra.mxu0 0
        %572 = vmatprep.subr.bf16.mxu0 0
        %573 = vmatpush1.bf16.msra.mxu0 0
        %574 = vmatprep.subr.bf16.mxu0 0
        %575 = vmatpush1.bf16.msra.mxu0 0
        %576 = vmatprep.subr.bf16.mxu0 0
        %577 = vmatpush1.bf16.msra.mxu0 0
        %578 = vmatprep.subr.bf16.mxu0 0
        %579 = vmatpush1.bf16.msra.mxu0 0
        %580 = vmatprep.subr.bf16.mxu0 0
        %581 = vmatpush1.bf16.msra.mxu0 0
        %582 = vmatprep.subr.bf16.mxu0 0
        %583 = vmatpush1.bf16.msra.mxu0 %v566
        %584 = vmatprep.subr.bf16.mxu0 0
        %585 = vmatpush2.bf16.msra.mxu0 0
        %586 = vmatprep.subr.bf16.mxu0 0
        %587 = vmatpush2.bf16.msra.mxu0 0
        %588 = vmatprep.subr.bf16.mxu0 0
        %589 = vmatpush2.bf16.msra.mxu0 0
        %590 = vmatprep.subr.bf16.mxu0 0
        %591 = vmatpush2.bf16.msra.mxu0 0
        %592 = vmatprep.subr.bf16.mxu0 0
        %593 = vmatpush2.bf16.msra.mxu0 0
        %594 = vmatprep.subr.bf16.mxu0 0
        %595 = vmatpush2.bf16.msra.mxu0 0
        %596 = vmatprep.subr.bf16.mxu0 0
        %597 = vmatpush2.bf16.msra.mxu0 0
        %598 = vmatprep.subr.bf16.mxu0 0
        %599 = vmatpush2.bf16.msra.mxu0 0
        %600 = vmatprep.mubr.bf16.mxu0 0
        %601 = vmatmul.mubr.bf16.gmra.mxu0 %v554
        %v602 = vpop.f32.mrf.mxu0
        %v603 = vadd.f32 %v498, %v602
        %v604 = vpop.f32.mrf.mxu0
        %v605 = vpop.f32.mrf.mxu0
        %v606 = vadd.f32 %v501, %v605
        %v607 = vpop.f32.mrf.mxu0
        %608 = vmatprep.mubr.bf16.mxu0 0
        %609 = vmatmul.mubr.bf16.gmra.mxu0 %v557
        %v610 = vpop.f32.mrf.mxu0
        %v611 = vadd.f32 %v506, %v610
        %v612 = vpop.f32.mrf.mxu0
        %v613 = vpop.f32.mrf.mxu0
        %v614 = vadd.f32 %v509, %v613
        %v615 = vpop.f32.mrf.mxu0
        %616 = vmatprep.mubr.bf16.mxu0 0
        %617 = vmatmul.mubr.bf16.gmra.mxu0 %v560
        %v618 = vpop.f32.mrf.mxu0
        %v619 = vadd.f32 %v514, %v618
        %v620 = vpop.f32.mrf.mxu0
        %v621 = vpop.f32.mrf.mxu0
        %v622 = vadd.f32 %v517, %v621
        %v623 = vpop.f32.mrf.mxu0
        %624 = vmatprep.mubr.bf16.mxu0 0
        %625 = vmatmul.mubr.bf16.gmra.mxu0 %v563
        %v626 = vpop.f32.mrf.mxu0
        %v627 = vadd.f32 %v522, %v626
        %v628 = vpop.f32.mrf.mxu0
        %v629 = vpop.f32.mrf.mxu0
        %v630 = vadd.f32 %v525, %v629
        %v631 = vpop.f32.mrf.mxu0
        %632 = vdwg.mxu0
        %s633 = scalar_lea.vmem %s291, 8
        %v634 = vld [vmem:[%s633] sm:$0xf]
        %v635 = vld [vmem:[%s633 + $0x8] sm:$0xf]
        %v636 = vld [vmem:[%s633 + $0x10] sm:$0xf]
        %v637 = vld [vmem:[%s633 + $0x18] sm:$0xf]
        %v638 = vld [vmem:[%s633 + $0x20] sm:$0xf]
        %v639 = vld [vmem:[%s633 + $0x28] sm:$0xf]
        %v640 = vld [vmem:[%s633 + $0x30] sm:$0xf]
        %v641 = vld [vmem:[%s633 + $0x38] sm:$0xf]
        %s642 = scalar_lea.vmem %s1, 16
        %v643 = vld [vmem:[%s642] sm:$0xf]
        %v644 = vld [vmem:[%s642 + $0x4] sm:$0x3]
        %v653 = vunpack.c.l.b16 %v634
        %v654 = vunpack.c.l.b16 %v635
        %v655 = vunpack.c.l.b16 %v636
        %v656 = vunpack.c.l.b16 %v637
        %v657 = vunpack.c.l.b16 %v638
        %v658 = vunpack.c.l.b16 %v639
        %v659 = vunpack.c.l.b16 %v640
        %v660 = vunpack.c.l.b16 %v641
        %v661 = vpack.c.b16 %v654, %v653
        %v662 = vpack.c.b16 %v656, %v655
        %v663 = vpack.c.b16 %v658, %v657
        %v664 = vpack.c.b16 %v660, %v659
        %v667 = vunpack.c.l.b16 %v643
        %v668 = vunpack.c.l.b16 %v644
        %v669 = vpack.c.b16 %v668, %v667
        %v671 = vsel %vm446, %v661, 0
        %v674 = vsel %vm446, %v662, 0
        %v677 = vsel %vm446, %v663, 0
        %v680 = vsel %vm446, %v664, 0
        %v683 = vsel %vm459, %v669, 0
        %685 = vmatprep.subr.bf16.mxu0 0
        %686 = vmatpush1.bf16.msra.mxu0 0
        %687 = vmatprep.subr.bf16.mxu0 0
        %688 = vmatpush1.bf16.msra.mxu0 0
        %689 = vmatprep.subr.bf16.mxu0 0
        %690 = vmatpush1.bf16.msra.mxu0 0
        %691 = vmatprep.subr.bf16.mxu0 0
        %692 = vmatpush1.bf16.msra.mxu0 0
        %693 = vmatprep.subr.bf16.mxu0 0
        %694 = vmatpush1.bf16.msra.mxu0 0
        %695 = vmatprep.subr.bf16.mxu0 0
        %696 = vmatpush1.bf16.msra.mxu0 0
        %697 = vmatprep.subr.bf16.mxu0 0
        %698 = vmatpush1.bf16.msra.mxu0 0
        %699 = vmatprep.subr.bf16.mxu0 0
        %700 = vmatpush1.bf16.msra.mxu0 %v683
        %701 = vmatprep.subr.bf16.mxu0 0
        %702 = vmatpush2.bf16.msra.mxu0 0
        %703 = vmatprep.subr.bf16.mxu0 0
        %704 = vmatpush2.bf16.msra.mxu0 0
        %705 = vmatprep.subr.bf16.mxu0 0
        %706 = vmatpush2.bf16.msra.mxu0 0
        %707 = vmatprep.subr.bf16.mxu0 0
        %708 = vmatpush2.bf16.msra.mxu0 0
        %709 = vmatprep.subr.bf16.mxu0 0
        %710 = vmatpush2.bf16.msra.mxu0 0
        %711 = vmatprep.subr.bf16.mxu0 0
        %712 = vmatpush2.bf16.msra.mxu0 0
        %713 = vmatprep.subr.bf16.mxu0 0
        %714 = vmatpush2.bf16.msra.mxu0 0
        %715 = vmatprep.subr.bf16.mxu0 0
        %716 = vmatpush2.bf16.msra.mxu0 0
        %717 = vmatprep.mubr.bf16.mxu0 0
        %718 = vmatmul.mubr.bf16.gmra.mxu0 %v671
        %v719 = vpop.f32.mrf.mxu0
        %v720 = vadd.f32 0.0, %v719
        %v721 = vpop.f32.mrf.mxu0
        %v722 = vpop.f32.mrf.mxu0
        %v723 = vadd.f32 0.0, %v722
        %v724 = vpop.f32.mrf.mxu0
        %725 = vmatprep.mubr.bf16.mxu0 0
        %726 = vmatmul.mubr.bf16.gmra.mxu0 %v674
        %v727 = vpop.f32.mrf.mxu0
        %v728 = vadd.f32 0.0, %v727
        %v729 = vpop.f32.mrf.mxu0
        %v730 = vpop.f32.mrf.mxu0
        %v731 = vadd.f32 0.0, %v730
        %v732 = vpop.f32.mrf.mxu0
        %733 = vmatprep.mubr.bf16.mxu0 0
        %734 = vmatmul.mubr.bf16.gmra.mxu0 %v677
        %v735 = vpop.f32.mrf.mxu0
        %v736 = vadd.f32 0.0, %v735
        %v737 = vpop.f32.mrf.mxu0
        %v738 = vpop.f32.mrf.mxu0
        %v739 = vadd.f32 0.0, %v738
        %v740 = vpop.f32.mrf.mxu0
        %741 = vmatprep.mubr.bf16.mxu0 0
        %742 = vmatmul.mubr.bf16.gmra.mxu0 %v680
        %v743 = vpop.f32.mrf.mxu0
        %v744 = vadd.f32 0.0, %v743
        %v745 = vpop.f32.mrf.mxu0
        %v746 = vpop.f32.mrf.mxu0
        %v747 = vadd.f32 0.0, %v746
        %v748 = vpop.f32.mrf.mxu0
        %749 = vdwg.mxu0
        %v750 = vadd.f32 %v603, %v720
        %v751 = vadd.f32 %v606, %v723
        %v752 = vadd.f32 %v611, %v728
        %v753 = vadd.f32 %v614, %v731
        %v754 = vadd.f32 %v619, %v736
        %v755 = vadd.f32 %v622, %v739
        %v756 = vadd.f32 %v627, %v744
        %v757 = vadd.f32 %v630, %v747
        %v758 = vld [vmem:[%s633] sm:$0xf]
        %v759 = vld [vmem:[%s633 + $0x4] sm:$0x1]
        %v760 = vld [vmem:[%s633 + $0x8] sm:$0xf]
        %v761 = vld [vmem:[%s633 + $0xc] sm:$0x1]
        %v762 = vld [vmem:[%s633 + $0x10] sm:$0xf]
        %v763 = vld [vmem:[%s633 + $0x14] sm:$0x1]
        %v764 = vld [vmem:[%s633 + $0x18] sm:$0xf]
        %v765 = vld [vmem:[%s633 + $0x1c] sm:$0x1]
        %v766 = vld [vmem:[%s633 + $0x20] sm:$0xf]
        %v767 = vld [vmem:[%s633 + $0x24] sm:$0x1]
        %v768 = vld [vmem:[%s633 + $0x28] sm:$0xf]
        %v769 = vld [vmem:[%s633 + $0x2c] sm:$0x1]
        %v770 = vld [vmem:[%s633 + $0x30] sm:$0xf]
        %v771 = vld [vmem:[%s633 + $0x34] sm:$0x1]
        %v772 = vld [vmem:[%s633 + $0x38] sm:$0xf]
        %v773 = vld [vmem:[%s633 + $0x3c] sm:$0x1]
        %v775 = vshrl.u32 %v758, 16
        %v777 = vrot.slane %v775, 4
        %v778 = vshll.u32 %v758, 16
        %v780 = vrot.slane %v778, 5
        %v781 = vor.u32 %v777, %v780
        %v782 = vrot.slane %v781, 4
        %v784 = vshll.u32 %v759, 16
        %v786 = vrot.slane %v784, 5
        %v787 = vsel %vm313, %v782, %v786
        %v789 = vshrl.u32 %v760, 16
        %v791 = vrot.slane %v789, 4
        %v792 = vshll.u32 %v760, 16
        %v794 = vrot.slane %v792, 5
        %v795 = vor.u32 %v791, %v794
        %v796 = vrot.slane %v795, 4
        %v798 = vshll.u32 %v761, 16
        %v800 = vrot.slane %v798, 5
        %v801 = vsel %vm313, %v796, %v800
        %v803 = vshrl.u32 %v762, 16
        %v805 = vrot.slane %v803, 4
        %v806 = vshll.u32 %v762, 16
        %v808 = vrot.slane %v806, 5
        %v809 = vor.u32 %v805, %v808
        %v810 = vrot.slane %v809, 4
        %v812 = vshll.u32 %v763, 16
        %v814 = vrot.slane %v812, 5
        %v815 = vsel %vm313, %v810, %v814
        %v817 = vshrl.u32 %v764, 16
        %v819 = vrot.slane %v817, 4
        %v820 = vshll.u32 %v764, 16
        %v822 = vrot.slane %v820, 5
        %v823 = vor.u32 %v819, %v822
        %v824 = vrot.slane %v823, 4
        %v826 = vshll.u32 %v765, 16
        %v828 = vrot.slane %v826, 5
        %v829 = vsel %vm313, %v824, %v828
        %v831 = vshrl.u32 %v766, 16
        %v833 = vrot.slane %v831, 4
        %v834 = vshll.u32 %v766, 16
        %v836 = vrot.slane %v834, 5
        %v837 = vor.u32 %v833, %v836
        %v838 = vrot.slane %v837, 4
        %v840 = vshll.u32 %v767, 16
        %v842 = vrot.slane %v840, 5
        %v843 = vsel %vm313, %v838, %v842
        %v845 = vshrl.u32 %v768, 16
        %v847 = vrot.slane %v845, 4
        %v848 = vshll.u32 %v768, 16
        %v850 = vrot.slane %v848, 5
        %v851 = vor.u32 %v847, %v850
        %v852 = vrot.slane %v851, 4
        %v854 = vshll.u32 %v769, 16
        %v856 = vrot.slane %v854, 5
        %v857 = vsel %vm313, %v852, %v856
        %v859 = vshrl.u32 %v770, 16
        %v861 = vrot.slane %v859, 4
        %v862 = vshll.u32 %v770, 16
        %v864 = vrot.slane %v862, 5
        %v865 = vor.u32 %v861, %v864
        %v866 = vrot.slane %v865, 4
        %v868 = vshll.u32 %v771, 16
        %v870 = vrot.slane %v868, 5
        %v871 = vsel %vm313, %v866, %v870
        %v873 = vshrl.u32 %v772, 16
        %v875 = vrot.slane %v873, 4
        %v876 = vshll.u32 %v772, 16
        %v878 = vrot.slane %v876, 5
        %v879 = vor.u32 %v875, %v878
        %v880 = vrot.slane %v879, 4
        %v882 = vshll.u32 %v773, 16
        %v884 = vrot.slane %v882, 5
        %v885 = vsel %vm313, %v880, %v884
        %s886 = scalar_lea.vmem %s1, 24
        %v887 = vld [vmem:[%s886] sm:$0xf]
        %v888 = vld [vmem:[%s886 + $0x4] sm:$0x3]
        %v889 = vunpack.c.l.b16 %v787
        %v890 = vunpack.c.l.b16 %v801
        %v891 = vunpack.c.l.b16 %v815
        %v892 = vunpack.c.l.b16 %v829
        %v893 = vunpack.c.l.b16 %v843
        %v894 = vunpack.c.l.b16 %v857
        %v895 = vunpack.c.l.b16 %v871
        %v896 = vunpack.c.l.b16 %v885
        %v897 = vpack.c.b16 %v890, %v889
        %v898 = vpack.c.b16 %v892, %v891
        %v899 = vpack.c.b16 %v894, %v893
        %v900 = vpack.c.b16 %v896, %v895
        %v903 = vunpack.c.l.b16 %v887
        %v904 = vunpack.c.l.b16 %v888
        %v905 = vpack.c.b16 %v904, %v903
        %v907 = vsel %vm446, %v897, 0
        %v910 = vsel %vm446, %v898, 0
        %v913 = vsel %vm446, %v899, 0
        %v916 = vsel %vm446, %v900, 0
        %v919 = vsel %vm459, %v905, 0
        %921 = vmatprep.subr.bf16.mxu0 0
        %922 = vmatpush1.bf16.msra.mxu0 0
        %923 = vmatprep.subr.bf16.mxu0 0
        %924 = vmatpush1.bf16.msra.mxu0 0
        %925 = vmatprep.subr.bf16.mxu0 0
        %926 = vmatpush1.bf16.msra.mxu0 0
        %927 = vmatprep.subr.bf16.mxu0 0
        %928 = vmatpush1.bf16.msra.mxu0 0
        %929 = vmatprep.subr.bf16.mxu0 0
        %930 = vmatpush1.bf16.msra.mxu0 0
        %931 = vmatprep.subr.bf16.mxu0 0
        %932 = vmatpush1.bf16.msra.mxu0 0
        %933 = vmatprep.subr.bf16.mxu0 0
        %934 = vmatpush1.bf16.msra.mxu0 0
        %935 = vmatprep.subr.bf16.mxu0 0
        %936 = vmatpush1.bf16.msra.mxu0 %v919
        %937 = vmatprep.subr.bf16.mxu0 0
        %938 = vmatpush2.bf16.msra.mxu0 0
        %939 = vmatprep.subr.bf16.mxu0 0
        %940 = vmatpush2.bf16.msra.mxu0 0
        %941 = vmatprep.subr.bf16.mxu0 0
        %942 = vmatpush2.bf16.msra.mxu0 0
        %943 = vmatprep.subr.bf16.mxu0 0
        %944 = vmatpush2.bf16.msra.mxu0 0
        %945 = vmatprep.subr.bf16.mxu0 0
        %946 = vmatpush2.bf16.msra.mxu0 0
        %947 = vmatprep.subr.bf16.mxu0 0
        %948 = vmatpush2.bf16.msra.mxu0 0
        %949 = vmatprep.subr.bf16.mxu0 0
        %950 = vmatpush2.bf16.msra.mxu0 0
        %951 = vmatprep.subr.bf16.mxu0 0
        %952 = vmatpush2.bf16.msra.mxu0 0
        %953 = vmatprep.mubr.bf16.mxu0 0
        %954 = vmatmul.mubr.bf16.gmra.mxu0 %v907
        %v955 = vpop.f32.mrf.mxu0
        %v956 = vadd.f32 0.0, %v955
        %v957 = vpop.f32.mrf.mxu0
        %v958 = vpop.f32.mrf.mxu0
        %v959 = vadd.f32 0.0, %v958
        %v960 = vpop.f32.mrf.mxu0
        %961 = vmatprep.mubr.bf16.mxu0 0
        %962 = vmatmul.mubr.bf16.gmra.mxu0 %v910
        %v963 = vpop.f32.mrf.mxu0
        %v964 = vadd.f32 0.0, %v963
        %v965 = vpop.f32.mrf.mxu0
        %v966 = vpop.f32.mrf.mxu0
        %v967 = vadd.f32 0.0, %v966
        %v968 = vpop.f32.mrf.mxu0
        %969 = vmatprep.mubr.bf16.mxu0 0
        %970 = vmatmul.mubr.bf16.gmra.mxu0 %v913
        %v971 = vpop.f32.mrf.mxu0
        %v972 = vadd.f32 0.0, %v971
        %v973 = vpop.f32.mrf.mxu0
        %v974 = vpop.f32.mrf.mxu0
        %v975 = vadd.f32 0.0, %v974
        %v976 = vpop.f32.mrf.mxu0
        %977 = vmatprep.mubr.bf16.mxu0 0
        %978 = vmatmul.mubr.bf16.gmra.mxu0 %v916
        %v979 = vpop.f32.mrf.mxu0
        %v980 = vadd.f32 0.0, %v979
        %v981 = vpop.f32.mrf.mxu0
        %v982 = vpop.f32.mrf.mxu0
        %v983 = vadd.f32 0.0, %v982
        %v984 = vpop.f32.mrf.mxu0
        %985 = vdwg.mxu0
        %v986 = vadd.f32 %v750, %v956
        %v987 = vadd.f32 %v751, %v959
        %v988 = vadd.f32 %v752, %v964
        %v989 = vadd.f32 %v753, %v967
        %v990 = vadd.f32 %v754, %v972
        %v991 = vadd.f32 %v755, %v975
        %v992 = vadd.f32 %v756, %v980
        %v993 = vadd.f32 %v757, %v983
        %v994 = vld [vmem:[%s2] sm:$0x1]
        %v996 = vlaneseq
        %v997 = vshrl.u32 %v996, 7
        %v998 = vsub.s32 0, %v997
        %v999 = vrot.slane %v994, %v998
        %v1001 = vmul.f32 %v986, %v999
        %v1002 = vmul.f32 %v987, %v999
        %v1003 = vmul.f32 %v988, %v999
        %v1004 = vmul.f32 %v989, %v999
        %v1005 = vmul.f32 %v990, %v999
        %v1006 = vmul.f32 %v991, %v999
        %v1007 = vmul.f32 %v992, %v999
        %v1008 = vmul.f32 %v993, %v999
        %v1009 = vld [vmem:[%s3] sm:$0x1]
        %v1011 = vlaneseq
        %v1012 = vshrl.u32 %v1011, 7
        %v1013 = vsub.s32 0, %v1012
        %v1014 = vrot.slane %v1009, %v1013
        %v1016 = vadd.f32 %v1001, %v1014
        %v1017 = vadd.f32 %v1002, %v1014
        %v1018 = vadd.f32 %v1003, %v1014
        %v1019 = vadd.f32 %v1004, %v1014
        %v1020 = vadd.f32 %v1005, %v1014
        %v1021 = vadd.f32 %v1006, %v1014
        %v1022 = vadd.f32 %v1007, %v1014
        %v1023 = vadd.f32 %v1008, %v1014
        %v1024 = vxor.u32 %v1016, 2147483648
        %v1025 = vxor.u32 %v1017, 2147483648
        %v1026 = vxor.u32 %v1018, 2147483648
        %v1027 = vxor.u32 %v1019, 2147483648
        %v1028 = vxor.u32 %v1020, 2147483648
        %v1029 = vxor.u32 %v1021, 2147483648
        %v1030 = vxor.u32 %v1022, 2147483648
        %v1031 = vxor.u32 %v1023, 2147483648
        %v1032 = vmul.f32 %v1024, 1.442695
        %v1033 = vpow.pop %v1032
        %v1034 = vmul.f32 %v1025, 1.442695
        %v1035 = vpow.pop %v1034
        %v1036 = vmul.f32 %v1026, 1.442695
        %v1037 = vpow.pop %v1036
        %v1038 = vmul.f32 %v1027, 1.442695
        %v1039 = vpow.pop %v1038
        %v1040 = vmul.f32 %v1028, 1.442695
        %v1041 = vpow.pop %v1040
        %v1042 = vmul.f32 %v1029, 1.442695
        %v1043 = vpow.pop %v1042
        %v1044 = vmul.f32 %v1030, 1.442695
        %v1045 = vpow.pop %v1044
        %v1046 = vmul.f32 %v1031, 1.442695
        %v1047 = vpow.pop %v1046
        %v1048 = vadd.f32 %v1033, 1.0
        %v1049 = vadd.f32 %v1035, 1.0
        %v1050 = vadd.f32 %v1037, 1.0
        %v1051 = vadd.f32 %v1039, 1.0
        %v1052 = vadd.f32 %v1041, 1.0
        %v1053 = vadd.f32 %v1043, 1.0
        %v1054 = vadd.f32 %v1045, 1.0
        %v1055 = vadd.f32 %v1047, 1.0
        %v1056 = vrcp.pop %v1048
        %v1057 = vmul.f32 1.0, %v1056
        %v1058 = vrcp.pop %v1049
        %v1059 = vmul.f32 1.0, %v1058
        %v1060 = vrcp.pop %v1050
        %v1061 = vmul.f32 1.0, %v1060
        %v1062 = vrcp.pop %v1051
        %v1063 = vmul.f32 1.0, %v1062
        %v1064 = vrcp.pop %v1052
        %v1065 = vmul.f32 1.0, %v1064
        %v1066 = vrcp.pop %v1053
        %v1067 = vmul.f32 1.0, %v1066
        %v1068 = vrcp.pop %v1054
        %v1069 = vmul.f32 1.0, %v1068
        %v1070 = vrcp.pop %v1055
        %v1071 = vmul.f32 1.0, %v1070
        %v1072 = vmul.f32 %v1016, %v1057
        %v1073 = vmul.f32 %v1017, %v1059
        %v1074 = vmul.f32 %v1018, %v1061
        %v1075 = vmul.f32 %v1019, %v1063
        %v1076 = vmul.f32 %v1020, %v1065
        %v1077 = vmul.f32 %v1021, %v1067
        %v1078 = vmul.f32 %v1022, %v1069
        %v1079 = vmul.f32 %v1023, %v1071
        %v1080 = vadd.f32 %v1072, %v1073
        %v1081 = vadd.f32 %v1080, %v1074
        %v1082 = vadd.f32 %v1081, %v1075
        %v1083 = vadd.f32 %v1082, %v1076
        %v1084 = vadd.f32 %v1083, %v1077
        %v1085 = vadd.f32 %v1084, %v1078
        %v1086 = vadd.f32 %v1085, %v1079
        %v1087 = vrot.slane %v1086, 4
        %v1088 = vadd.f32 %v1086, %v1087
        %v1089 = vrot.slane %v1088, 2
        %v1090 = vadd.f32 %v1088, %v1089
        %v1091 = vrot.slane %v1090, 1
        %v1092 = vadd.f32 %v1090, %v1091
        %v1093 = vmul.f32 %v1092, 0.015625
        %v1094 = vld [vmem:[#allocation2] sm:$0xff]
        %v1095 = vld [vmem:[#allocation2 + $0x8] sm:$0xff]
        %v1096 = vld [vmem:[#allocation2 + $0x10] sm:$0xff]
        %v1097 = vld [vmem:[#allocation2 + $0x18] sm:$0xff]
        %v1098 = vld [vmem:[#allocation2 + $0x20] sm:$0xff]
        %v1099 = vld [vmem:[#allocation2 + $0x28] sm:$0xff]
        %v1100 = vld [vmem:[#allocation2 + $0x30] sm:$0xff]
        %v1101 = vld [vmem:[#allocation2 + $0x38] sm:$0xff]
        %v1102 = vld [vmem:[#allocation2 + $0x40] sm:$0xff]
        %v1103 = vld [vmem:[#allocation2 + $0x48] sm:$0xff]
        %v1104 = vld [vmem:[#allocation2 + $0x50] sm:$0xff]
        %v1105 = vld [vmem:[#allocation2 + $0x58] sm:$0xff]
        %v1106 = vld [vmem:[#allocation2 + $0x60] sm:$0xff]
        %v1107 = vld [vmem:[#allocation2 + $0x68] sm:$0xff]
        %v1108 = vld [vmem:[#allocation2 + $0x70] sm:$0xff]
        %v1109 = vld [vmem:[#allocation2 + $0x78] sm:$0xff]
        %v1110 = vld [vmem:[#allocation2 + $0x80] sm:$0xff]
        %v1111 = vld [vmem:[#allocation2 + $0x88] sm:$0xff]
        %v1112 = vld [vmem:[#allocation2 + $0x90] sm:$0xff]
        %v1113 = vld [vmem:[#allocation2 + $0x98] sm:$0xff]
        %v1114 = vld [vmem:[#allocation2 + $0xa0] sm:$0xff]
        %v1115 = vld [vmem:[#allocation2 + $0xa8] sm:$0xff]
        %v1116 = vld [vmem:[#allocation2 + $0xb0] sm:$0xff]
        %v1117 = vld [vmem:[#allocation2 + $0xb8] sm:$0xff]
        %v1118 = vld [vmem:[#allocation2 + $0xc0] sm:$0xff]
        %v1119 = vld [vmem:[#allocation2 + $0xc8] sm:$0xff]
        %v1120 = vld [vmem:[#allocation2 + $0xd0] sm:$0xff]
        %v1121 = vld [vmem:[#allocation2 + $0xd8] sm:$0xff]
        %v1122 = vld [vmem:[#allocation2 + $0xe0] sm:$0xff]
        %v1123 = vld [vmem:[#allocation2 + $0xe8] sm:$0xff]
        %v1124 = vld [vmem:[#allocation2 + $0xf0] sm:$0xff]
        %v1125 = vld [vmem:[#allocation2 + $0xf8] sm:$0xff]
        %v1126 = vld [vmem:[#allocation2 + $0x100] sm:$0xff]
        %v1127 = vld [vmem:[#allocation2 + $0x108] sm:$0xff]
        %v1128 = vld [vmem:[#allocation2 + $0x110] sm:$0xff]
        %v1129 = vld [vmem:[#allocation2 + $0x118] sm:$0xff]
        %v1130 = vld [vmem:[#allocation2 + $0x120] sm:$0xff]
        %v1131 = vld [vmem:[#allocation2 + $0x128] sm:$0xff]
        %v1132 = vld [vmem:[#allocation2 + $0x130] sm:$0xff]
        %v1133 = vld [vmem:[#allocation2 + $0x138] sm:$0xff]
        %v1134 = vld [vmem:[#allocation2 + $0x140] sm:$0xff]
        %v1135 = vld [vmem:[#allocation2 + $0x148] sm:$0xff]
        %v1136 = vld [vmem:[#allocation2 + $0x150] sm:$0xff]
        %v1137 = vld [vmem:[#allocation2 + $0x158] sm:$0xff]
        %v1138 = vld [vmem:[#allocation2 + $0x160] sm:$0xff]
        %v1139 = vld [vmem:[#allocation2 + $0x168] sm:$0xff]
        %v1140 = vld [vmem:[#allocation2 + $0x170] sm:$0xff]
        %v1141 = vld [vmem:[#allocation2 + $0x178] sm:$0xff]
        %v1142 = vld [vmem:[#allocation2 + $0x180] sm:$0xff]
        %v1143 = vld [vmem:[#allocation2 + $0x188] sm:$0xff]
        %v1144 = vld [vmem:[#allocation2 + $0x190] sm:$0xff]
        %v1145 = vld [vmem:[#allocation2 + $0x198] sm:$0xff]
        %v1146 = vld [vmem:[#allocation2 + $0x1a0] sm:$0xff]
        %v1147 = vld [vmem:[#allocation2 + $0x1a8] sm:$0xff]
        %v1148 = vld [vmem:[#allocation2 + $0x1b0] sm:$0xff]
        %v1149 = vld [vmem:[#allocation2 + $0x1b8] sm:$0xff]
        %v1150 = vld [vmem:[#allocation2 + $0x1c0] sm:$0xff]
        %v1151 = vld [vmem:[#allocation2 + $0x1c8] sm:$0xff]
        %v1152 = vld [vmem:[#allocation2 + $0x1d0] sm:$0xff]
        %v1153 = vld [vmem:[#allocation2 + $0x1d8] sm:$0xff]
        %v1154 = vld [vmem:[#allocation2 + $0x1e0] sm:$0xff]
        %v1155 = vld [vmem:[#allocation2 + $0x1e8] sm:$0xff]
        %v1156 = vld [vmem:[#allocation2 + $0x1f0] sm:$0xff]
        %v1157 = vld [vmem:[#allocation2 + $0x1f8] sm:$0xff]
        %1158 = vmatprep.subr.mxu0 %v1155
        %1159 = vmatpush1.msra.mxu0 %v1154
        %1160 = vmatprep.subr.mxu0 %v1151
        %1161 = vmatpush1.msra.mxu0 %v1150
        %1162 = vmatprep.subr.mxu0 %v1147
        %1163 = vmatpush1.msra.mxu0 %v1146
        %1164 = vmatprep.subr.mxu0 %v1143
        %1165 = vmatpush1.msra.mxu0 %v1142
        %1166 = vmatprep.subr.mxu0 %v1139
        %1167 = vmatpush1.msra.mxu0 %v1138
        %1168 = vmatprep.subr.mxu0 %v1135
        %1169 = vmatpush1.msra.mxu0 %v1134
        %1170 = vmatprep.subr.mxu0 %v1131
        %1171 = vmatpush1.msra.mxu0 %v1130
        %1172 = vmatprep.subr.mxu0 %v1127
        %1173 = vmatpush1.msra.mxu0 %v1126
        %1174 = vmatprep.subr.mxu0 %v1123
        %1175 = vmatpush1.msra.mxu0 %v1122
        %1176 = vmatprep.subr.mxu0 %v1119
        %1177 = vmatpush1.msra.mxu0 %v1118
        %1178 = vmatprep.subr.mxu0 %v1115
        %1179 = vmatpush1.msra.mxu0 %v1114
        %1180 = vmatprep.subr.mxu0 %v1111
        %1181 = vmatpush1.msra.mxu0 %v1110
        %1182 = vmatprep.subr.mxu0 %v1107
        %1183 = vmatpush1.msra.mxu0 %v1106
        %1184 = vmatprep.subr.mxu0 %v1103
        %1185 = vmatpush1.msra.mxu0 %v1102
        %1186 = vmatprep.subr.mxu0 %v1099
        %1187 = vmatpush1.msra.mxu0 %v1098
        %1188 = vmatprep.subr.mxu0 %v1095
        %1189 = vmatpush1.msra.mxu0 %v1094
        %1190 = vmatprep.subr.mxu0 0.0
        %1191 = vmatpush2.msra.mxu0 0.0
        %1192 = vmatprep.subr.mxu0 0.0
        %1193 = vmatpush2.msra.mxu0 0.0
        %1194 = vmatprep.subr.mxu0 0.0
        %1195 = vmatpush2.msra.mxu0 0.0
        %1196 = vmatprep.subr.mxu0 0.0
        %1197 = vmatpush2.msra.mxu0 0.0
        %1198 = vmatprep.subr.mxu0 0.0
        %1199 = vmatpush2.msra.mxu0 0.0
        %1200 = vmatprep.subr.mxu0 0.0
        %1201 = vmatpush2.msra.mxu0 0.0
        %1202 = vmatprep.subr.mxu0 0.0
        %1203 = vmatpush2.msra.mxu0 0.0
        %1204 = vmatprep.subr.mxu0 0.0
        %1205 = vmatpush2.msra.mxu0 0.0
        %1206 = vmatprep.subr.mxu0 0.0
        %1207 = vmatpush2.msra.mxu0 0.0
        %1208 = vmatprep.subr.mxu0 0.0
        %1209 = vmatpush2.msra.mxu0 0.0
        %1210 = vmatprep.subr.mxu0 0.0
        %1211 = vmatpush2.msra.mxu0 0.0
        %1212 = vmatprep.subr.mxu0 0.0
        %1213 = vmatpush2.msra.mxu0 0.0
        %1214 = vmatprep.subr.mxu0 0.0
        %1215 = vmatpush2.msra.mxu0 0.0
        %1216 = vmatprep.subr.mxu0 0.0
        %1217 = vmatpush2.msra.mxu0 0.0
        %1218 = vmatprep.subr.mxu0 0.0
        %1219 = vmatpush2.msra.mxu0 0.0
        %1220 = vmatprep.subr.mxu0 0.0
        %1221 = vmatpush2.msra.mxu0 0.0
        %1222 = vmatprep.mubr.f32.mxu0 0.0
        %1223 = vmatmul.mubr.f32.gmra.mxu0 %v1093
        %v1224 = vpop.f32.mrf.mxu0
        %v1225 = vadd.f32 0.0, %v1224
        %v1226 = vpop.f32.mrf.mxu0
        %v1227 = vadd.f32 0.0, %v1226
        %1228 = vdwg.mxu0
        %1229 = vmatprep.subr.mxu0 %v1157
        %1230 = vmatpush1.msra.mxu0 %v1156
        %1231 = vmatprep.subr.mxu0 %v1153
        %1232 = vmatpush1.msra.mxu0 %v1152
        %1233 = vmatprep.subr.mxu0 %v1149
        %1234 = vmatpush1.msra.mxu0 %v1148
        %1235 = vmatprep.subr.mxu0 %v1145
        %1236 = vmatpush1.msra.mxu0 %v1144
        %1237 = vmatprep.subr.mxu0 %v1141
        %1238 = vmatpush1.msra.mxu0 %v1140
        %1239 = vmatprep.subr.mxu0 %v1137
        %1240 = vmatpush1.msra.mxu0 %v1136
        %1241 = vmatprep.subr.mxu0 %v1133
        %1242 = vmatpush1.msra.mxu0 %v1132
        %1243 = vmatprep.subr.mxu0 %v1129
        %1244 = vmatpush1.msra.mxu0 %v1128
        %1245 = vmatprep.subr.mxu0 %v1125
        %1246 = vmatpush1.msra.mxu0 %v1124
        %1247 = vmatprep.subr.mxu0 %v1121
        %1248 = vmatpush1.msra.mxu0 %v1120
        %1249 = vmatprep.subr.mxu0 %v1117
        %1250 = vmatpush1.msra.mxu0 %v1116
        %1251 = vmatprep.subr.mxu0 %v1113
        %1252 = vmatpush1.msra.mxu0 %v1112
        %1253 = vmatprep.subr.mxu0 %v1109
        %1254 = vmatpush1.msra.mxu0 %v1108
        %1255 = vmatprep.subr.mxu0 %v1105
        %1256 = vmatpush1.msra.mxu0 %v1104
        %1257 = vmatprep.subr.mxu0 %v1101
        %1258 = vmatpush1.msra.mxu0 %v1100
        %1259 = vmatprep.subr.mxu0 %v1097
        %1260 = vmatpush1.msra.mxu0 %v1096
        %1261 = vmatprep.subr.mxu0 0.0
        %1262 = vmatpush2.msra.mxu0 0.0
        %1263 = vmatprep.subr.mxu0 0.0
        %1264 = vmatpush2.msra.mxu0 0.0
        %1265 = vmatprep.subr.mxu0 0.0
        %1266 = vmatpush2.msra.mxu0 0.0
        %1267 = vmatprep.subr.mxu0 0.0
        %1268 = vmatpush2.msra.mxu0 0.0
        %1269 = vmatprep.subr.mxu0 0.0
        %1270 = vmatpush2.msra.mxu0 0.0
        %1271 = vmatprep.subr.mxu0 0.0
        %1272 = vmatpush2.msra.mxu0 0.0
        %1273 = vmatprep.subr.mxu0 0.0
        %1274 = vmatpush2.msra.mxu0 0.0
        %1275 = vmatprep.subr.mxu0 0.0
        %1276 = vmatpush2.msra.mxu0 0.0
        %1277 = vmatprep.subr.mxu0 0.0
        %1278 = vmatpush2.msra.mxu0 0.0
        %1279 = vmatprep.subr.mxu0 0.0
        %1280 = vmatpush2.msra.mxu0 0.0
        %1281 = vmatprep.subr.mxu0 0.0
        %1282 = vmatpush2.msra.mxu0 0.0
        %1283 = vmatprep.subr.mxu0 0.0
        %1284 = vmatpush2.msra.mxu0 0.0
        %1285 = vmatprep.subr.mxu0 0.0
        %1286 = vmatpush2.msra.mxu0 0.0
        %1287 = vmatprep.subr.mxu0 0.0
        %1288 = vmatpush2.msra.mxu0 0.0
        %1289 = vmatprep.subr.mxu0 0.0
        %1290 = vmatpush2.msra.mxu0 0.0
        %1291 = vmatprep.subr.mxu0 0.0
        %1292 = vmatpush2.msra.mxu0 0.0
        %1293 = vmatprep.mubr.f32.mxu0 0.0
        %1294 = vmatmul.mubr.f32.gmra.mxu0 %v1093
        %v1295 = vpop.f32.mrf.mxu0
        %v1296 = vadd.f32 0.0, %v1295
        %v1297 = vpop.f32.mrf.mxu0
        %v1298 = vadd.f32 0.0, %v1297
        %1299 = vdwg.mxu0
        %v1300 = vld [vmem:[%s5] sm:$0xf]
        %v1302 = vlaneseq
        %v1303 = vshrl.u32 %v1302, 7
        %v1304 = vsub.s32 0, %v1303
        %v1305 = vrot.slane %v1300, %v1304
        %v1306 = vlaneseq
        %v1307 = vshrl.u32 %v1306, 7
        %v1308 = vsub.s32 1, %v1307
        %v1309 = vrot.slane %v1300, %v1308
        %v1310 = vlaneseq
        %v1311 = vshrl.u32 %v1310, 7
        %v1312 = vsub.s32 2, %v1311
        %v1313 = vrot.slane %v1300, %v1312
        %v1314 = vlaneseq
        %v1315 = vshrl.u32 %v1314, 7
        %v1316 = vsub.s32 3, %v1315
        %v1317 = vrot.slane %v1300, %v1316
        %v1322 = vmul.f32 %v1225, %v1305
        %v1323 = vmul.f32 %v1227, %v1309
        %v1324 = vmul.f32 %v1296, %v1313
        %v1325 = vmul.f32 %v1298, %v1317
        %v1326 = vld [vmem:[%s6] sm:$0xf]
        %v1328 = vlaneseq
        %v1329 = vshrl.u32 %v1328, 7
        %v1330 = vsub.s32 0, %v1329
        %v1331 = vrot.slane %v1326, %v1330
        %v1332 = vlaneseq
        %v1333 = vshrl.u32 %v1332, 7
        %v1334 = vsub.s32 1, %v1333
        %v1335 = vrot.slane %v1326, %v1334
        %v1336 = vlaneseq
        %v1337 = vshrl.u32 %v1336, 7
        %v1338 = vsub.s32 2, %v1337
        %v1339 = vrot.slane %v1326, %v1338
        %v1340 = vlaneseq
        %v1341 = vshrl.u32 %v1340, 7
        %v1342 = vsub.s32 3, %v1341
        %v1343 = vrot.slane %v1326, %v1342
        %v1348 = vadd.f32 %v1322, %v1331
        %v1349 = vadd.f32 %v1323, %v1335
        %v1350 = vadd.f32 %v1324, %v1339
        %v1351 = vadd.f32 %v1325, %v1343
        %v1352 = vmul.f32 %v1348, %v1348
        %v1353 = vmul.f32 %v1349, %v1349
        %v1354 = vmul.f32 %v1350, %v1350
        %v1355 = vmul.f32 %v1351, %v1351
        %vm1356 = vcmask 1040384
        %v1357 = vsel %vm1356, %v1352, 0.0
        %v1358 = vsel %vm1356, %v1353, 0.0
        %v1359 = vadd.f32 %v1357, %v1358
        %v1360 = vsel %vm1356, %v1354, 0.0
        %v1361 = vadd.f32 %v1359, %v1360
        %v1362 = vsel %vm1356, %v1355, 0.0
        %v1363 = vadd.f32 %v1361, %v1362
        %1364 = vadd.xlane.f32.xlu0 %v1363
        %v1365 = vpop.xlane.xlu0 %1364
        %v1366 = vmax.f32 %v1365, 1e-24
        %v1367 = vrsqrt.pop %v1366
        %v1368 = vmul.f32 %v1348, %v1367
        %v1369 = vmul.f32 %v1349, %v1367
        %v1370 = vmul.f32 %v1350, %v1367
        %v1371 = vmul.f32 %v1351, %v1367
        %v1376 = vcombine.low %v1368, %v1369
        %v1377 = vcombine.low %v1370, %v1371
        %v1379 = vunpack.c.l.s4 1966171168
        %v1380 = vunpack.c.0.s8 %v1379
        %v1381 = vlaneseq
        %v1382 = vshrl.u32 %v1381, 7
        %v1383 = vsub.s32 %v1380, %v1382
        %v1384 = vrot.slane %v1376, %v1383
        %v1386 = vunpack.c.l.s4 1966171168
        %v1387 = vunpack.c.0.s8 %v1386
        %v1388 = vlaneseq
        %v1389 = vshrl.u32 %v1388, 7
        %v1390 = vsub.s32 %v1387, %v1389
        %v1391 = vrot.slane %v1377, %v1390
        %v1392 = vcombine.low %v1384, %v1391
        %v1394 = vunpack.c.l.s4 1966171168
        %v1395 = vunpack.c.0.s8 %v1394
        %v1396 = vlaneseq
        %v1397 = vshrl.u32 %v1396, 7
        %v1398 = vsub.s32 %v1395, %v1397
        %v1399 = vrot.slane %v1392, %v1398
        %v1401 = vlaneseq
        %vm1402 = vcmp.ge.s32.totalorder %v1401, 0
        %vm1403 = vcmp.lt.s32.totalorder %v1401, 512
        %vm1404 = vmand %vm1402, %vm1403
        %1405 = vst.msk [vmem:[%s286] sm:$0xf] %vm1404, %v1399
        %s1406 = sand.u32 %s182, 1
        %s1407 = scalar_lea.sflag [#allocation4], %s1406
        %s1408 = sand.u32 %s182, 1
        %s1409 = smul.addr %s1408, 4
        %s1410 = scalar_lea.vmem [#allocation5], %s1409
        // Predicated region
        $region53: #{tpu_custom_call.1} parent=47 // pred_check
          %p1411 = pneg %p192
        $region54: #{tpu_custom_call.1} parent=47 // pred_check_branch
          %1413 = sbr.rel (%p1411) target = $region56
        $region55: #{tpu_custom_call.1} parent=47 // pred_region
          %s1415 = ssub.s32 64, 64
          %1416 = vsyncadd %s1407, %s1415
          %s1417 = smul.addr %s22, 4
          %s1418 = smul.addr %s1417, 16
          %s1419 = scalar_lea.hbm %s7, %s1418
          %s1421 = sshll.u32 %s1410, 4
          %s1422 = int_to_ptr.vmem [resolvable:$true] %s1421
          %1424 = dma.vmem_to_hbm [thread:$0]  %s1422, 64, %s1419, %s1407
        $region56: #{tpu_custom_call.1} parent=47 // pred_fallthru
          _
      $region48: #{tpu_custom_call.1} parent=5 // pred_fallthru
        _
      %p1425 = scmp.le.s32.totalorder 2, %s17
      // Predicated region
      $region57: #{tpu_custom_call.1} parent=5 // pred_check
        %p1426 = pneg %p1425
      $region58: #{tpu_custom_call.1} parent=5 // pred_check_branch
        %1428 = sbr.rel (%p1426) target = $region60
      $region59: #{tpu_custom_call.1} parent=5 // pred_region
        %s1429 = ssub.s32 %s17, 2
        // Predicated region
        $region61: #{tpu_custom_call.1} parent=59 // pred_check
          %p1430 = pneg %p198
        $region62: #{tpu_custom_call.1} parent=59 // pred_check_branch
          %1432 = sbr.rel (%p1430) target = $region64
        $region63: #{tpu_custom_call.1} parent=59 // pred_region
          %s1433 = sand.u32 %s183, 1
          %s1434 = scalar_lea.sflag [#allocation4], %s1433
          %s1435 = sand.u32 %s183, 1
          %s1436 = smul.addr %s1435, 4
          %s1437 = scalar_lea.vmem [#allocation5], %s1436
          %1438 = dma.done %s1434, 64
        $region64: #{tpu_custom_call.1} parent=59 // pred_fallthru
          _
      $region60: #{tpu_custom_call.1} parent=5 // pred_fallthru
        _
    $region6: #{tpu_custom_call.1} parent=1 // loop_footer
      %s21 = sadd.s32 1, %s17
    $region7: #{tpu_custom_call.1} parent=1 // loop_footer_branch
      %16 = sbr.rel target = $region3
    $region8: #{tpu_custom_call.1} parent=1 // loop_exit
      _
    %1439 = vsyncpa [#allocation3], 1
    %s1440 = scalar_lea.sflag [#allocation3], 1
    %1441 = vsyncpa %s1440, 1
    %1442 = vsyncpa [#allocation4], 1
    %s1443 = scalar_lea.sflag [#allocation4], 1
    %1444 = vsyncpa %s1443, 1

</llo_original>
